<compile_context>
chip_gen: v7x
topology: tpu7x:2x2x1
jax: 0.10.0
libtpu: 0.0.40
codegen_flags: <defaults>
</compile_context>

<pallas_src>
import jax
import jax.numpy as jnp
from jax import lax
from jax.experimental import pallas as pl
from jax.experimental.pallas import tpu as pltpu

# ----------------------------- config ------------------------------------
HIDDEN = 32
HEADS = 2
HEAD_DIM = HIDDEN // HEADS
INTERMEDIATE = 64
LAYERS = 2
VOCAB = 100
MAX_POS = 16
TYPE_VOCAB = 2
NUM_LABELS = 3
SEQ = 8
BATCH = 2
TOKENS = BATCH * SEQ                     # 16 rows of (token, hidden) activations
STACK = HEADS * TOKENS                   # 32 rows of head/batch-stacked attention
LN_EPS = 1e-12
FOCAL_SMOOTH = 1e-4                      # MultiFocalLoss.smooth
FOCAL_ALPHA = 0.5                        # ones(num_class) - 0.5 (module default)
ATT_SCALE = 1.0 / (HEAD_DIM ** 0.5)
NEG_INF = -1e9
WORD_OFF = ((MAX_POS + TYPE_VOCAB + 7) // 8) * 8   # 24 (sublane-aligned word-table start)
SEQ_SHIFT = SEQ.bit_length() - 1                   # log2(SEQ)
assert (1 << SEQ_SHIFT) == SEQ

# bias/LN slab row layout (per layer, lane offset always 0)
_R_BQKV, _R_BO, _R_G1, _R_B1, _R_BI, _R_BO2, _R_G2, _R_B2 = range(8)


# ----------------------------- fused kernel --------------------------------
def _bert_kernel(ids_ref, mask_ref, labels_ref,
                 emb_ref, w_ref, wo2_ref, b_ref, head_ref,
                 logits_ref, loss_ref):
    """Embeddings + 2 encoder layers + pooler + classifier + focal loss."""
    f32 = jnp.float32

    def layernorm(x, g, b):
        mu = jnp.mean(x, axis=-1, keepdims=True)
        var = jnp.mean(jnp.square(x - mu), axis=-1, keepdims=True)
        return (x - mu) * lax.rsqrt(var + LN_EPS) * g + b

    # ---- embeddings: gathers folded into the kernel ----
    ids = ids_ref[...]                                              # (T, 1) int32
    vocab_iota = lax.broadcasted_iota(jnp.int32, (TOKENS, VOCAB), 1)
    onehot_ids = (vocab_iota == ids).astype(f32)                    # (T, V)
    word_tab = emb_ref[pl.ds(WORD_OFF, VOCAB), :]                   # (V, H)
    we = jnp.dot(onehot_ids, word_tab, preferred_element_type=f32)  # (T, H)
    pos_rows = emb_ref[pl.ds(0, SEQ), :]                            # (S, H)
    pe = jnp.concatenate([pos_rows] * BATCH, axis=0)                # (T, H) aligned concat
    te = emb_ref[pl.ds(MAX_POS, 1), :]                              # (1, H) token-type 0
    emb_g = head_ref[pl.ds(HIDDEN + 0, 1), pl.ds(0, HIDDEN)]
    emb_b = head_ref[pl.ds(HIDDEN + 1, 1), pl.ds(0, HIDDEN)]
    h = layernorm(we + pe + te, emb_g, emb_b)                       # (T, H)
    # TODO(synk): hidden/attention/classifier dropout treated as identity (eval mode).
    # TODO(synk): token_type_ids hard-coded to zeros (matches reference passing None).

    # ---- combined additive mask for head/batch-stacked scores (hoisted, built once) ----
    key_bias = (1.0 - mask_ref[...].astype(f32)) * NEG_INF          # (1, T)
    key_bias = jnp.concatenate([key_bias] * HEADS, axis=1)          # (1, STACK)
    r_blk = jnp.right_shift(
        lax.broadcasted_iota(jnp.int32, (STACK, STACK), 0), SEQ_SHIFT)
    c_blk = jnp.right_shift(
        lax.broadcasted_iota(jnp.int32, (STACK, STACK), 1), SEQ_SHIFT)
    mask_ss = jnp.where(r_blk == c_blk, key_bias, f32(NEG_INF))     # (STACK, STACK)

    for l in range(LAYERS):                         # static unroll, LAYERS = 2
        w = w_ref[l]                                # (H, 3H + H + I) = [Wqkv | Wo | Wi]
        bias = b_ref[l]                             # (8, 3H)
        bqkv = bias[_R_BQKV:_R_BQKV + 1, :]
        bo   = bias[_R_BO:_R_BO + 1, 0:HIDDEN]
        g1   = bias[_R_G1:_R_G1 + 1, 0:HIDDEN]
        b1   = bias[_R_B1:_R_B1 + 1, 0:HIDDEN]
        bi   = bias[_R_BI:_R_BI + 1, 0:INTERMEDIATE]
        bo2  = bias[_R_BO2:_R_BO2 + 1, 0:HIDDEN]
        g2   = bias[_R_G2:_R_G2 + 1, 0:HIDDEN]
        b2   = bias[_R_B2:_R_B2 + 1, 0:HIDDEN]
        wqkv = w[:, 0:3 * HIDDEN]
        wo   = w[:, 3 * HIDDEN:4 * HIDDEN]
        wi   = w[:, 4 * HIDDEN:4 * HIDDEN + INTERMEDIATE]

        # fused QKV projection: one (T,H) x (H,3H) MXU matmul
        qkv = jnp.dot(h, wqkv, preferred_element_type=f32) + bqkv   # (T, 3H)

        # fold heads onto the row axis: (STACK, HEAD_DIM) = [head0 tokens ; head1 tokens]
        qc = jnp.concatenate(
            [qkv[:, hh * HEAD_DIM:(hh + 1) * HEAD_DIM] for hh in range(HEADS)], axis=0)
        kc = jnp.concatenate(
            [qkv[:, HIDDEN + hh * HEAD_DIM:HIDDEN + (hh + 1) * HEAD_DIM]
             for hh in range(HEADS)], axis=0)
        vc = jnp.concatenate(
            [qkv[:, 2 * HIDDEN + hh * HEAD_DIM:2 * HIDDEN + (hh + 1) * HEAD_DIM]
             for hh in range(HEADS)], axis=0)

        # one score matmul + one context matmul for ALL batches * heads
        s = lax.dot_general(qc, kc, (((1,), (1,)), ((), ())),
                            preferred_element_type=f32)             # (STACK, STACK)
        s = s * ATT_SCALE + mask_ss
        s = s - jnp.max(s, axis=-1, keepdims=True)
        p = jnp.exp(s)
        p = p * pl.reciprocal(jnp.sum(p, axis=-1, keepdims=True), approx=True)
        ctx = jnp.dot(p, vc, preferred_element_type=f32)             # (STACK, HEAD_DIM)

        # fold heads back through the output projection (no context concat)
        attn = bo
        for hh in range(HEADS):
            attn = attn + jnp.dot(ctx[hh * TOKENS:(hh + 1) * TOKENS, :],
                                  wo[hh * HEAD_DIM:(hh + 1) * HEAD_DIM, :],
                                  preferred_element_type=f32)
        h = layernorm(attn + h, g1, b1)

        # feed-forward (GELU) + residual + LN
        # TODO(synk): exact erf GELU not lowered; tanh approximation used.
        ff = jax.nn.gelu(jnp.dot(h, wi, preferred_element_type=f32) + bi,
                         approximate=True)
        ff = jnp.dot(ff, wo2_ref[l], preferred_element_type=f32) + bo2
        h = layernorm(ff + h, g2, b2)

    # ---- pooler: CLS rows picked with a tiny constant selection matmul ----
    sel = (lax.broadcasted_iota(jnp.int32, (BATCH, TOKENS), 1) ==
           lax.broadcasted_iota(jnp.int32, (BATCH, TOKENS), 0) * SEQ).astype(f32)
    cls = jnp.dot(sel, h, preferred_element_type=f32)                # (B, H)
    wp = head_ref[pl.ds(0, HIDDEN), pl.ds(0, HIDDEN)]
    wc = head_ref[pl.ds(0, HIDDEN), pl.ds(HIDDEN, NUM_LABELS)]
    bp = head_ref[pl.ds(HIDDEN + 2, 1), pl.ds(0, HIDDEN)]
    bc = head_ref[pl.ds(HIDDEN + 3, 1), pl.ds(0, NUM_LABELS)]
    pooled = jnp.tanh(jnp.dot(cls, wp, preferred_element_type=f32) + bp)
    logits = jnp.dot(pooled, wc, preferred_element_type=f32) + bc    # (B, C)
    logits_ref[...] = logits

    # ---- MultiFocalLoss (gamma=2, alpha=0.5 constant, smooth=1e-4, mean) ----
    m = jnp.max(logits, axis=-1, keepdims=True)
    e = jnp.exp(logits - m)
    prob = e * pl.reciprocal(jnp.sum(e, axis=-1, keepdims=True), approx=True)
    row_iota = lax.broadcasted_iota(jnp.int32, (BATCH, NUM_LABELS), 0)
    col_iota = lax.broadcasted_iota(jnp.int32, (BATCH, NUM_LABELS), 1)
    target = jnp.zeros((BATCH, NUM_LABELS), jnp.int32)
    for b in range(BATCH):                       # labels live in SMEM (scalar reads)
        target = jnp.where(row_iota == b, labels_ref[b], target)
    onehot = (col_iota == target).astype(f32)
    pt = jnp.sum(prob * onehot, axis=-1, keepdims=True) + FOCAL_SMOOTH
    loss_vec = -FOCAL_ALPHA * jnp.square(1.0 - pt) * jnp.log(pt)
    loss_ref[0] = jnp.sum(loss_vec) * (1.0 / BATCH)


# ----------------------------- params ------------------------------------
def _dense(key, shape):
    return jax.random.normal(key, shape, jnp.float32) * 0.02


def init_params(key):
    """Weights packed at init time into a few slabs (no per-call packing ops)."""
    ks = jax.random.split(key, 9)
    word = _dense(ks[0], (VOCAB, HIDDEN))
    pos = _dense(ks[1], (MAX_POS, HIDDEN))
    typ = _dense(ks[2], (TYPE_VOCAB, HIDDEN))
    emb_tab = jnp.zeros((WORD_OFF + VOCAB, HIDDEN), jnp.float32)
    emb_tab = emb_tab.at[0:MAX_POS].set(pos)
    emb_tab = emb_tab.at[MAX_POS:MAX_POS + TYPE_VOCAB].set(typ)
    emb_tab = emb_tab.at[WORD_OFF:WORD_OFF + VOCAB].set(word)

    wqkv = _dense(ks[3], (LAYERS, HIDDEN, 3 * HIDDEN))
    wo = _dense(ks[4], (LAYERS, HIDDEN, HIDDEN))
    wi = _dense(ks[5], (LAYERS, HIDDEN, INTERMEDIATE))
    w_slab = jnp.concatenate([wqkv, wo, wi], axis=-1)        # (L, H, 3H+H+I)
    wo2 = _dense(ks[6], (LAYERS, INTERMEDIATE, HIDDEN))

    # bias/LN slab: rows = [bqkv, bo, ln1_g, ln1_b, bi, bo2, ln2_g, ln2_b]
    b_slab = jnp.zeros((LAYERS, 8, 3 * HIDDEN), jnp.float32)
    b_slab = b_slab.at[:, _R_G1, 0:HIDDEN].set(1.0)
    b_slab = b_slab.at[:, _R_G2, 0:HIDDEN].set(1.0)

    wp = _dense(ks[7], (HIDDEN, HIDDEN))
    wc = _dense(ks[8], (HIDDEN, NUM_LABELS))
    # head slab: [Wp | Wc] on rows 0:H, then rows H..H+3 = emb_ln_g, emb_ln_b, bp, bc
    head_slab = jnp.zeros((HIDDEN + 8, HIDDEN + NUM_LABELS), jnp.float32)
    head_slab = head_slab.at[0:HIDDEN, 0:HIDDEN].set(wp)
    head_slab = head_slab.at[0:HIDDEN, HIDDEN:].set(wc)
    head_slab = head_slab.at[HIDDEN + 0, 0:HIDDEN].set(1.0)   # embedding LN gamma

    return {"emb_tab": emb_tab, "w_slab": w_slab, "wo2": wo2,
            "b_slab": b_slab, "head": head_slab}


# ----------------------------- forward ------------------------------------
def bert_with_focal_loss(params, input_ids, attention_mask, labels):
    # Only free reshapes remain in the wrapper; all gathers/math live in the kernel.
    ids2d = input_ids.reshape(TOKENS, 1).astype(jnp.int32)
    mask_row = attention_mask.reshape(1, TOKENS).astype(jnp.int32)
    labels1d = labels.reshape(BATCH).astype(jnp.int32)

    vmem = pltpu.MemorySpace.VMEM
    smem = pltpu.MemorySpace.SMEM
    logits, loss = pl.pallas_call(
        _bert_kernel,
        out_shape=(jax.ShapeDtypeStruct((BATCH, NUM_LABELS), jnp.float32),
                   jax.ShapeDtypeStruct((1,), jnp.float32)),
        in_specs=[pl.BlockSpec(memory_space=vmem),    # token ids (T,1)
                  pl.BlockSpec(memory_space=vmem),    # attention mask (1,T)
                  pl.BlockSpec(memory_space=smem),    # labels (B,)
                  pl.BlockSpec(memory_space=vmem),    # embedding tables slab
                  pl.BlockSpec(memory_space=vmem),    # per-layer weight slab
                  pl.BlockSpec(memory_space=vmem),    # FFN down-projection
                  pl.BlockSpec(memory_space=vmem),    # bias/LN slab
                  pl.BlockSpec(memory_space=vmem)],   # pooler/classifier/emb-LN slab
        out_specs=(pl.BlockSpec(memory_space=vmem),
                   pl.BlockSpec(memory_space=smem)),
    )(ids2d, mask_row, labels1d,
      params["emb_tab"], params["w_slab"], params["wo2"],
      params["b_slab"], params["head"])
    return loss[0], logits


# ----------------------------- main ---------------------------------------
if __name__ == "__main__":
    key = jax.random.PRNGKey(0)
    k_params, k_ids, k_labels = jax.random.split(key, 3)

    params = init_params(k_params)
    input_ids = jax.random.randint(k_ids, (BATCH, SEQ), 0, VOCAB, dtype=jnp.int32)
    attention_mask = jnp.ones((BATCH, SEQ), jnp.int32).at[1, SEQ - 2:].set(0)
    labels = jax.random.randint(k_labels, (BATCH,), 0, NUM_LABELS, dtype=jnp.int32)

    fwd = jax.jit(bert_with_focal_loss)
    loss, logits = fwd(params, input_ids, attention_mask, labels)
    jax.block_until_ready((loss, logits))
    print("KERNEL_OK")
</pallas_src>

<mosaic_0001>
module attributes {stable_mosaic.version = 11 : i64} {
  func.func @_bert_kernel(%arg0: memref<16x1xi32, #tpu.memory_space<vmem>>, %arg1: memref<1x16xi32, #tpu.memory_space<vmem>>, %arg2: memref<2xi32, #tpu.memory_space<smem>>, %arg3: memref<124x32xf32, #tpu.memory_space<vmem>>, %arg4: memref<2x32x192xf32, #tpu.memory_space<vmem>>, %arg5: memref<2x64x32xf32, #tpu.memory_space<vmem>>, %arg6: memref<2x8x96xf32, #tpu.memory_space<vmem>>, %arg7: memref<40x35xf32, #tpu.memory_space<vmem>>, %arg8: memref<2x3xf32, #tpu.memory_space<vmem>>, %arg9: memref<1xf32, #tpu.memory_space<smem>>) attributes {dimension_semantics = [], scalar_prefetch = 0 : i64, scratch_operands = 0 : i64, tpu.core_type = #tpu.core_type<tc>} {
    %c0 = arith.constant 0 : index
    %c0_0 = arith.constant 0 : index
    %0 = vector.load %arg0[%c0, %c0_0] : memref<16x1xi32, #tpu.memory_space<vmem>>, vector<16x1xi32>
    %1 = tpu.iota {dimensions = array<i32: 1>} : vector<16x100xi32>
    %2 = vector.broadcast %0 : vector<16x1xi32> to vector<16x100xi32>
    %3 = arith.cmpi eq, %1, %2 : vector<16x100xi32>
    %4 = arith.extui %3 : vector<16x100xi1> to vector<16x100xi32>
    %5 = arith.sitofp %4 : vector<16x100xi32> to vector<16x100xf32>
    %c24 = arith.constant 24 : index
    %c0_1 = arith.constant 0 : index
    %6 = vector.load %arg3[%c24, %c0_1] : memref<124x32xf32, #tpu.memory_space<vmem>>, vector<100x32xf32>
    %cst = arith.constant dense<0.000000e+00> : vector<16x32xf32>
    %7 = tpu.matmul %5, %6, %cst {dimension_numbers = #tpu.dot_dimension_numbers<[1], [0], [0], [1], [0, 0, 1, 1], [], []>} : vector<16x100xf32>, vector<100x32xf32>, vector<16x32xf32> -> vector<16x32xf32>
    %c0_2 = arith.constant 0 : index
    %c0_3 = arith.constant 0 : index
    %8 = vector.load %arg3[%c0_2, %c0_3] : memref<124x32xf32, #tpu.memory_space<vmem>>, vector<8x32xf32>
    %9 = tpu.concatenate %8, %8 in 0 : vector<8x32xf32>, vector<8x32xf32> -> vector<16x32xf32>
    %c16 = arith.constant 16 : index
    %c0_4 = arith.constant 0 : index
    %10 = vector.load %arg3[%c16, %c0_4] : memref<124x32xf32, #tpu.memory_space<vmem>>, vector<1x32xf32>
    %c32 = arith.constant 32 : index
    %c0_5 = arith.constant 0 : index
    %11 = vector.load %arg7[%c32, %c0_5] : memref<40x35xf32, #tpu.memory_space<vmem>>, vector<1x32xf32>
    %c33 = arith.constant 33 : index
    %c0_6 = arith.constant 0 : index
    %12 = vector.load %arg7[%c33, %c0_6] : memref<40x35xf32, #tpu.memory_space<vmem>>, vector<1x32xf32>
    %13 = arith.addf %7, %9 : vector<16x32xf32>
    %14 = vector.broadcast %10 : vector<1x32xf32> to vector<16x32xf32>
    %15 = arith.addf %13, %14 : vector<16x32xf32>
    %cst_7 = arith.constant dense<0.000000e+00> : vector<16xf32>
    %16 = vector.multi_reduction <add>, %15, %cst_7 [1] : vector<16x32xf32> to vector<16xf32>
    %17 = vector.shape_cast %16 : vector<16xf32> to vector<16x1xf32>
    %cst_8 = arith.constant 3.200000e+01 : f32
    %18 = vector.broadcast %cst_8 : f32 to vector<16x1xf32>
    %19 = arith.divf %17, %18 : vector<16x1xf32>
    %20 = vector.broadcast %19 : vector<16x1xf32> to vector<16x32xf32>
    %21 = arith.subf %15, %20 : vector<16x32xf32>
    %22 = arith.mulf %21, %21 : vector<16x32xf32>
    %cst_9 = arith.constant dense<0.000000e+00> : vector<16xf32>
    %23 = vector.multi_reduction <add>, %22, %cst_9 [1] : vector<16x32xf32> to vector<16xf32>
    %24 = vector.shape_cast %23 : vector<16xf32> to vector<16x1xf32>
    %cst_10 = arith.constant 3.200000e+01 : f32
    %25 = vector.broadcast %cst_10 : f32 to vector<16x1xf32>
    %26 = arith.divf %24, %25 : vector<16x1xf32>
    %27 = vector.broadcast %19 : vector<16x1xf32> to vector<16x32xf32>
    %28 = arith.subf %15, %27 : vector<16x32xf32>
    %cst_11 = arith.constant 9.99999996E-13 : f32
    %29 = vector.broadcast %cst_11 : f32 to vector<16x1xf32>
    %30 = arith.addf %26, %29 : vector<16x1xf32>
    %31 = math.rsqrt %30 : vector<16x1xf32>
    %32 = vector.broadcast %31 : vector<16x1xf32> to vector<16x32xf32>
    %33 = arith.mulf %28, %32 : vector<16x32xf32>
    %34 = vector.broadcast %11 : vector<1x32xf32> to vector<16x32xf32>
    %35 = arith.mulf %33, %34 : vector<16x32xf32>
    %36 = vector.broadcast %12 : vector<1x32xf32> to vector<16x32xf32>
    %37 = arith.addf %35, %36 : vector<16x32xf32>
    %c0_12 = arith.constant 0 : index
    %c0_13 = arith.constant 0 : index
    %38 = vector.load %arg1[%c0_12, %c0_13] : memref<1x16xi32, #tpu.memory_space<vmem>>, vector<1x16xi32>
    %39 = arith.sitofp %38 : vector<1x16xi32> to vector<1x16xf32>
    %cst_14 = arith.constant 1.000000e+00 : f32
    %40 = vector.broadcast %cst_14 : f32 to vector<1x16xf32>
    %41 = arith.subf %40, %39 : vector<1x16xf32>
    %cst_15 = arith.constant -1.000000e+09 : f32
    %42 = vector.broadcast %cst_15 : f32 to vector<1x16xf32>
    %43 = arith.mulf %41, %42 : vector<1x16xf32>
    %44 = tpu.concatenate %43, %43 in 1 : vector<1x16xf32>, vector<1x16xf32> -> vector<1x32xf32>
    %45 = tpu.iota {dimensions = array<i32: 0>} : vector<32x32xi32>
    %c3_i32 = arith.constant 3 : i32
    %46 = vector.broadcast %c3_i32 : i32 to vector<32x32xi32>
    %47 = arith.shrsi %45, %46 : vector<32x32xi32>
    %48 = tpu.iota {dimensions = array<i32: 1>} : vector<32x32xi32>
    %c3_i32_16 = arith.constant 3 : i32
    %49 = vector.broadcast %c3_i32_16 : i32 to vector<32x32xi32>
    %50 = arith.shrsi %48, %49 : vector<32x32xi32>
    %51 = arith.cmpi eq, %47, %50 : vector<32x32xi32>
    %cst_17 = arith.constant -1.000000e+09 : f32
    %52 = vector.shape_cast %44 : vector<1x32xf32> to vector<1x32xf32>
    %53 = vector.broadcast %52 : vector<1x32xf32> to vector<32x32xf32>
    %54 = vector.broadcast %cst_17 : f32 to vector<32x32xf32>
    %55 = arith.select %51, %53, %54 : vector<32x32xi1>, vector<32x32xf32>
    %c0_18 = arith.constant 0 : index
    %c0_19 = arith.constant 0 : index
    %c0_20 = arith.constant 0 : index
    %56 = vector.load %arg4[%c0_18, %c0_19, %c0_20] : memref<2x32x192xf32, #tpu.memory_space<vmem>>, vector<1x32x192xf32>
    %57 = vector.shape_cast %56 : vector<1x32x192xf32> to vector<32x192xf32>
    %c0_21 = arith.constant 0 : index
    %c0_22 = arith.constant 0 : index
    %c0_23 = arith.constant 0 : index
    %58 = vector.load %arg6[%c0_21, %c0_22, %c0_23] : memref<2x8x96xf32, #tpu.memory_space<vmem>>, vector<1x8x96xf32>
    %59 = vector.shape_cast %58 : vector<1x8x96xf32> to vector<8x96xf32>
    %60 = vector.extract_strided_slice %59 {offsets = [0, 0], sizes = [1, 96], strides = [1, 1]} : vector<8x96xf32> to vector<1x96xf32>
    %61 = vector.extract_strided_slice %59 {offsets = [1, 0], sizes = [1, 32], strides = [1, 1]} : vector<8x96xf32> to vector<1x32xf32>
    %62 = vector.extract_strided_slice %59 {offsets = [2, 0], sizes = [1, 32], strides = [1, 1]} : vector<8x96xf32> to vector<1x32xf32>
    %63 = vector.extract_strided_slice %59 {offsets = [3, 0], sizes = [1, 32], strides = [1, 1]} : vector<8x96xf32> to vector<1x32xf32>
    %64 = vector.extract_strided_slice %59 {offsets = [4, 0], sizes = [1, 64], strides = [1, 1]} : vector<8x96xf32> to vector<1x64xf32>
    %65 = vector.extract_strided_slice %59 {offsets = [5, 0], sizes = [1, 32], strides = [1, 1]} : vector<8x96xf32> to vector<1x32xf32>
    %66 = vector.extract_strided_slice %59 {offsets = [6, 0], sizes = [1, 32], strides = [1, 1]} : vector<8x96xf32> to vector<1x32xf32>
    %67 = vector.extract_strided_slice %59 {offsets = [7, 0], sizes = [1, 32], strides = [1, 1]} : vector<8x96xf32> to vector<1x32xf32>
    %68 = vector.extract_strided_slice %57 {offsets = [0, 0], sizes = [32, 96], strides = [1, 1]} : vector<32x192xf32> to vector<32x96xf32>
    %69 = vector.extract_strided_slice %57 {offsets = [0, 96], sizes = [32, 32], strides = [1, 1]} : vector<32x192xf32> to vector<32x32xf32>
    %70 = vector.extract_strided_slice %57 {offsets = [0, 128], sizes = [32, 64], strides = [1, 1]} : vector<32x192xf32> to vector<32x64xf32>
    %cst_24 = arith.constant dense<0.000000e+00> : vector<16x96xf32>
    %71 = tpu.matmul %37, %68, %cst_24 {dimension_numbers = #tpu.dot_dimension_numbers<[1], [0], [0], [1], [0, 0, 1, 1], [], []>} : vector<16x32xf32>, vector<32x96xf32>, vector<16x96xf32> -> vector<16x96xf32>
    %72 = vector.broadcast %60 : vector<1x96xf32> to vector<16x96xf32>
    %73 = arith.addf %71, %72 : vector<16x96xf32>
    %74 = vector.extract_strided_slice %73 {offsets = [0, 0], sizes = [16, 16], strides = [1, 1]} : vector<16x96xf32> to vector<16x16xf32>
    %75 = vector.extract_strided_slice %73 {offsets = [0, 16], sizes = [16, 16], strides = [1, 1]} : vector<16x96xf32> to vector<16x16xf32>
    %76 = tpu.concatenate %74, %75 in 0 : vector<16x16xf32>, vector<16x16xf32> -> vector<32x16xf32>
    %77 = vector.extract_strided_slice %73 {offsets = [0, 32], sizes = [16, 16], strides = [1, 1]} : vector<16x96xf32> to vector<16x16xf32>
    %78 = vector.extract_strided_slice %73 {offsets = [0, 48], sizes = [16, 16], strides = [1, 1]} : vector<16x96xf32> to vector<16x16xf32>
    %79 = tpu.concatenate %77, %78 in 0 : vector<16x16xf32>, vector<16x16xf32> -> vector<32x16xf32>
    %80 = vector.extract_strided_slice %73 {offsets = [0, 64], sizes = [16, 16], strides = [1, 1]} : vector<16x96xf32> to vector<16x16xf32>
    %81 = vector.extract_strided_slice %73 {offsets = [0, 80], sizes = [16, 16], strides = [1, 1]} : vector<16x96xf32> to vector<16x16xf32>
    %82 = tpu.concatenate %80, %81 in 0 : vector<16x16xf32>, vector<16x16xf32> -> vector<32x16xf32>
    %cst_25 = arith.constant dense<0.000000e+00> : vector<32x32xf32>
    %83 = tpu.matmul %76, %79, %cst_25 {dimension_numbers = #tpu.dot_dimension_numbers<[1], [1], [0], [0], [0, 0, 1, 0], [], []>} : vector<32x16xf32>, vector<32x16xf32>, vector<32x32xf32> -> vector<32x32xf32>
    %cst_26 = arith.constant 2.500000e-01 : f32
    %84 = vector.broadcast %cst_26 : f32 to vector<32x32xf32>
    %85 = arith.mulf %83, %84 : vector<32x32xf32>
    %86 = arith.addf %85, %55 : vector<32x32xf32>
    %cst_27 = arith.constant dense<0xFF800000> : vector<32xf32>
    %87 = vector.multi_reduction <maximumf>, %86, %cst_27 [1] : vector<32x32xf32> to vector<32xf32>
    %88 = vector.shape_cast %87 : vector<32xf32> to vector<32x1xf32>
    %89 = vector.broadcast %88 : vector<32x1xf32> to vector<32x32xf32>
    %90 = arith.subf %86, %89 : vector<32x32xf32>
    %91 = math.exp %90 : vector<32x32xf32>
    %cst_28 = arith.constant dense<0.000000e+00> : vector<32xf32>
    %92 = vector.multi_reduction <add>, %91, %cst_28 [1] : vector<32x32xf32> to vector<32xf32>
    %93 = vector.shape_cast %92 : vector<32xf32> to vector<32x1xf32>
    %94 = tpu.reciprocal %93 {approx = true} : vector<32x1xf32> -> vector<32x1xf32>
    %95 = vector.broadcast %94 : vector<32x1xf32> to vector<32x32xf32>
    %96 = arith.mulf %91, %95 : vector<32x32xf32>
    %cst_29 = arith.constant dense<0.000000e+00> : vector<32x16xf32>
    %97 = tpu.matmul %96, %82, %cst_29 {dimension_numbers = #tpu.dot_dimension_numbers<[1], [0], [0], [1], [0, 0, 1, 1], [], []>} : vector<32x32xf32>, vector<32x16xf32>, vector<32x16xf32> -> vector<32x16xf32>
    %98 = vector.extract_strided_slice %97 {offsets = [0, 0], sizes = [16, 16], strides = [1, 1]} : vector<32x16xf32> to vector<16x16xf32>
    %99 = vector.extract_strided_slice %69 {offsets = [0, 0], sizes = [16, 32], strides = [1, 1]} : vector<32x32xf32> to vector<16x32xf32>
    %cst_30 = arith.constant dense<0.000000e+00> : vector<16x32xf32>
    %100 = tpu.matmul %98, %99, %cst_30 {dimension_numbers = #tpu.dot_dimension_numbers<[1], [0], [0], [1], [0, 0, 1, 1], [], []>} : vector<16x16xf32>, vector<16x32xf32>, vector<16x32xf32> -> vector<16x32xf32>
    %101 = vector.broadcast %61 : vector<1x32xf32> to vector<16x32xf32>
    %102 = arith.addf %101, %100 : vector<16x32xf32>
    %103 = vector.extract_strided_slice %97 {offsets = [16, 0], sizes = [16, 16], strides = [1, 1]} : vector<32x16xf32> to vector<16x16xf32>
    %104 = vector.extract_strided_slice %69 {offsets = [16, 0], sizes = [16, 32], strides = [1, 1]} : vector<32x32xf32> to vector<16x32xf32>
    %cst_31 = arith.constant dense<0.000000e+00> : vector<16x32xf32>
    %105 = tpu.matmul %103, %104, %cst_31 {dimension_numbers = #tpu.dot_dimension_numbers<[1], [0], [0], [1], [0, 0, 1, 1], [], []>} : vector<16x16xf32>, vector<16x32xf32>, vector<16x32xf32> -> vector<16x32xf32>
    %106 = arith.addf %102, %105 : vector<16x32xf32>
    %107 = arith.addf %106, %37 : vector<16x32xf32>
    %cst_32 = arith.constant dense<0.000000e+00> : vector<16xf32>
    %108 = vector.multi_reduction <add>, %107, %cst_32 [1] : vector<16x32xf32> to vector<16xf32>
    %109 = vector.shape_cast %108 : vector<16xf32> to vector<16x1xf32>
    %cst_33 = arith.constant 3.200000e+01 : f32
    %110 = vector.broadcast %cst_33 : f32 to vector<16x1xf32>
    %111 = arith.divf %109, %110 : vector<16x1xf32>
    %112 = vector.broadcast %111 : vector<16x1xf32> to vector<16x32xf32>
    %113 = arith.subf %107, %112 : vector<16x32xf32>
    %114 = arith.mulf %113, %113 : vector<16x32xf32>
    %cst_34 = arith.constant dense<0.000000e+00> : vector<16xf32>
    %115 = vector.multi_reduction <add>, %114, %cst_34 [1] : vector<16x32xf32> to vector<16xf32>
    %116 = vector.shape_cast %115 : vector<16xf32> to vector<16x1xf32>
    %cst_35 = arith.constant 3.200000e+01 : f32
    %117 = vector.broadcast %cst_35 : f32 to vector<16x1xf32>
    %118 = arith.divf %116, %117 : vector<16x1xf32>
    %119 = vector.broadcast %111 : vector<16x1xf32> to vector<16x32xf32>
    %120 = arith.subf %107, %119 : vector<16x32xf32>
    %cst_36 = arith.constant 9.99999996E-13 : f32
    %121 = vector.broadcast %cst_36 : f32 to vector<16x1xf32>
    %122 = arith.addf %118, %121 : vector<16x1xf32>
    %123 = math.rsqrt %122 : vector<16x1xf32>
    %124 = vector.broadcast %123 : vector<16x1xf32> to vector<16x32xf32>
    %125 = arith.mulf %120, %124 : vector<16x32xf32>
    %126 = vector.broadcast %62 : vector<1x32xf32> to vector<16x32xf32>
    %127 = arith.mulf %125, %126 : vector<16x32xf32>
    %128 = vector.broadcast %63 : vector<1x32xf32> to vector<16x32xf32>
    %129 = arith.addf %127, %128 : vector<16x32xf32>
    %cst_37 = arith.constant dense<0.000000e+00> : vector<16x64xf32>
    %130 = tpu.matmul %129, %70, %cst_37 {dimension_numbers = #tpu.dot_dimension_numbers<[1], [0], [0], [1], [0, 0, 1, 1], [], []>} : vector<16x32xf32>, vector<32x64xf32>, vector<16x64xf32> -> vector<16x64xf32>
    %131 = vector.broadcast %64 : vector<1x64xf32> to vector<16x64xf32>
    %132 = arith.addf %130, %131 : vector<16x64xf32>
    %133 = arith.mulf %132, %132 : vector<16x64xf32>
    %134 = arith.mulf %132, %133 : vector<16x64xf32>
    %cst_38 = arith.constant 4.471500e-02 : f32
    %135 = vector.broadcast %cst_38 : f32 to vector<16x64xf32>
    %136 = arith.mulf %135, %134 : vector<16x64xf32>
    %137 = arith.addf %132, %136 : vector<16x64xf32>
    %cst_39 = arith.constant 0.797884583 : f32
    %138 = vector.broadcast %cst_39 : f32 to vector<16x64xf32>
    %139 = arith.mulf %138, %137 : vector<16x64xf32>
    %140 = math.tanh %139 : vector<16x64xf32>
    %cst_40 = arith.constant 1.000000e+00 : f32
    %141 = vector.broadcast %cst_40 : f32 to vector<16x64xf32>
    %142 = arith.addf %141, %140 : vector<16x64xf32>
    %cst_41 = arith.constant 5.000000e-01 : f32
    %143 = vector.broadcast %cst_41 : f32 to vector<16x64xf32>
    %144 = arith.mulf %143, %142 : vector<16x64xf32>
    %145 = arith.mulf %132, %144 : vector<16x64xf32>
    %c0_42 = arith.constant 0 : index
    %c0_43 = arith.constant 0 : index
    %c0_44 = arith.constant 0 : index
    %146 = vector.load %arg5[%c0_42, %c0_43, %c0_44] : memref<2x64x32xf32, #tpu.memory_space<vmem>>, vector<1x64x32xf32>
    %147 = vector.shape_cast %146 : vector<1x64x32xf32> to vector<64x32xf32>
    %cst_45 = arith.constant dense<0.000000e+00> : vector<16x32xf32>
    %148 = tpu.matmul %145, %147, %cst_45 {dimension_numbers = #tpu.dot_dimension_numbers<[1], [0], [0], [1], [0, 0, 1, 1], [], []>} : vector<16x64xf32>, vector<64x32xf32>, vector<16x32xf32> -> vector<16x32xf32>
    %149 = vector.broadcast %65 : vector<1x32xf32> to vector<16x32xf32>
    %150 = arith.addf %148, %149 : vector<16x32xf32>
    %151 = arith.addf %150, %129 : vector<16x32xf32>
    %cst_46 = arith.constant dense<0.000000e+00> : vector<16xf32>
    %152 = vector.multi_reduction <add>, %151, %cst_46 [1] : vector<16x32xf32> to vector<16xf32>
    %153 = vector.shape_cast %152 : vector<16xf32> to vector<16x1xf32>
    %cst_47 = arith.constant 3.200000e+01 : f32
    %154 = vector.broadcast %cst_47 : f32 to vector<16x1xf32>
    %155 = arith.divf %153, %154 : vector<16x1xf32>
    %156 = vector.broadcast %155 : vector<16x1xf32> to vector<16x32xf32>
    %157 = arith.subf %151, %156 : vector<16x32xf32>
    %158 = arith.mulf %157, %157 : vector<16x32xf32>
    %cst_48 = arith.constant dense<0.000000e+00> : vector<16xf32>
    %159 = vector.multi_reduction <add>, %158, %cst_48 [1] : vector<16x32xf32> to vector<16xf32>
    %160 = vector.shape_cast %159 : vector<16xf32> to vector<16x1xf32>
    %cst_49 = arith.constant 3.200000e+01 : f32
    %161 = vector.broadcast %cst_49 : f32 to vector<16x1xf32>
    %162 = arith.divf %160, %161 : vector<16x1xf32>
    %163 = vector.broadcast %155 : vector<16x1xf32> to vector<16x32xf32>
    %164 = arith.subf %151, %163 : vector<16x32xf32>
    %cst_50 = arith.constant 9.99999996E-13 : f32
    %165 = vector.broadcast %cst_50 : f32 to vector<16x1xf32>
    %166 = arith.addf %162, %165 : vector<16x1xf32>
    %167 = math.rsqrt %166 : vector<16x1xf32>
    %168 = vector.broadcast %167 : vector<16x1xf32> to vector<16x32xf32>
    %169 = arith.mulf %164, %168 : vector<16x32xf32>
    %170 = vector.broadcast %66 : vector<1x32xf32> to vector<16x32xf32>
    %171 = arith.mulf %169, %170 : vector<16x32xf32>
    %172 = vector.broadcast %67 : vector<1x32xf32> to vector<16x32xf32>
    %173 = arith.addf %171, %172 : vector<16x32xf32>
    %c1 = arith.constant 1 : index
    %c0_51 = arith.constant 0 : index
    %c0_52 = arith.constant 0 : index
    %174 = vector.load %arg4[%c1, %c0_51, %c0_52] : memref<2x32x192xf32, #tpu.memory_space<vmem>>, vector<1x32x192xf32>
    %175 = vector.shape_cast %174 : vector<1x32x192xf32> to vector<32x192xf32>
    %c1_53 = arith.constant 1 : index
    %c0_54 = arith.constant 0 : index
    %c0_55 = arith.constant 0 : index
    %176 = vector.load %arg6[%c1_53, %c0_54, %c0_55] : memref<2x8x96xf32, #tpu.memory_space<vmem>>, vector<1x8x96xf32>
    %177 = vector.shape_cast %176 : vector<1x8x96xf32> to vector<8x96xf32>
    %178 = vector.extract_strided_slice %177 {offsets = [0, 0], sizes = [1, 96], strides = [1, 1]} : vector<8x96xf32> to vector<1x96xf32>
    %179 = vector.extract_strided_slice %177 {offsets = [1, 0], sizes = [1, 32], strides = [1, 1]} : vector<8x96xf32> to vector<1x32xf32>
    %180 = vector.extract_strided_slice %177 {offsets = [2, 0], sizes = [1, 32], strides = [1, 1]} : vector<8x96xf32> to vector<1x32xf32>
    %181 = vector.extract_strided_slice %177 {offsets = [3, 0], sizes = [1, 32], strides = [1, 1]} : vector<8x96xf32> to vector<1x32xf32>
    %182 = vector.extract_strided_slice %177 {offsets = [4, 0], sizes = [1, 64], strides = [1, 1]} : vector<8x96xf32> to vector<1x64xf32>
    %183 = vector.extract_strided_slice %177 {offsets = [5, 0], sizes = [1, 32], strides = [1, 1]} : vector<8x96xf32> to vector<1x32xf32>
    %184 = vector.extract_strided_slice %177 {offsets = [6, 0], sizes = [1, 32], strides = [1, 1]} : vector<8x96xf32> to vector<1x32xf32>
    %185 = vector.extract_strided_slice %177 {offsets = [7, 0], sizes = [1, 32], strides = [1, 1]} : vector<8x96xf32> to vector<1x32xf32>
    %186 = vector.extract_strided_slice %175 {offsets = [0, 0], sizes = [32, 96], strides = [1, 1]} : vector<32x192xf32> to vector<32x96xf32>
    %187 = vector.extract_strided_slice %175 {offsets = [0, 96], sizes = [32, 32], strides = [1, 1]} : vector<32x192xf32> to vector<32x32xf32>
    %188 = vector.extract_strided_slice %175 {offsets = [0, 128], sizes = [32, 64], strides = [1, 1]} : vector<32x192xf32> to vector<32x64xf32>
    %cst_56 = arith.constant dense<0.000000e+00> : vector<16x96xf32>
    %189 = tpu.matmul %173, %186, %cst_56 {dimension_numbers = #tpu.dot_dimension_numbers<[1], [0], [0], [1], [0, 0, 1, 1], [], []>} : vector<16x32xf32>, vector<32x96xf32>, vector<16x96xf32> -> vector<16x96xf32>
    %190 = vector.broadcast %178 : vector<1x96xf32> to vector<16x96xf32>
    %191 = arith.addf %189, %190 : vector<16x96xf32>
    %192 = vector.extract_strided_slice %191 {offsets = [0, 0], sizes = [16, 16], strides = [1, 1]} : vector<16x96xf32> to vector<16x16xf32>
    %193 = vector.extract_strided_slice %191 {offsets = [0, 16], sizes = [16, 16], strides = [1, 1]} : vector<16x96xf32> to vector<16x16xf32>
    %194 = tpu.concatenate %192, %193 in 0 : vector<16x16xf32>, vector<16x16xf32> -> vector<32x16xf32>
    %195 = vector.extract_strided_slice %191 {offsets = [0, 32], sizes = [16, 16], strides = [1, 1]} : vector<16x96xf32> to vector<16x16xf32>
    %196 = vector.extract_strided_slice %191 {offsets = [0, 48], sizes = [16, 16], strides = [1, 1]} : vector<16x96xf32> to vector<16x16xf32>
    %197 = tpu.concatenate %195, %196 in 0 : vector<16x16xf32>, vector<16x16xf32> -> vector<32x16xf32>
    %198 = vector.extract_strided_slice %191 {offsets = [0, 64], sizes = [16, 16], strides = [1, 1]} : vector<16x96xf32> to vector<16x16xf32>
    %199 = vector.extract_strided_slice %191 {offsets = [0, 80], sizes = [16, 16], strides = [1, 1]} : vector<16x96xf32> to vector<16x16xf32>
    %200 = tpu.concatenate %198, %199 in 0 : vector<16x16xf32>, vector<16x16xf32> -> vector<32x16xf32>
    %cst_57 = arith.constant dense<0.000000e+00> : vector<32x32xf32>
    %201 = tpu.matmul %194, %197, %cst_57 {dimension_numbers = #tpu.dot_dimension_numbers<[1], [1], [0], [0], [0, 0, 1, 0], [], []>} : vector<32x16xf32>, vector<32x16xf32>, vector<32x32xf32> -> vector<32x32xf32>
    %cst_58 = arith.constant 2.500000e-01 : f32
    %202 = vector.broadcast %cst_58 : f32 to vector<32x32xf32>
    %203 = arith.mulf %201, %202 : vector<32x32xf32>
    %204 = arith.addf %203, %55 : vector<32x32xf32>
    %cst_59 = arith.constant dense<0xFF800000> : vector<32xf32>
    %205 = vector.multi_reduction <maximumf>, %204, %cst_59 [1] : vector<32x32xf32> to vector<32xf32>
    %206 = vector.shape_cast %205 : vector<32xf32> to vector<32x1xf32>
    %207 = vector.broadcast %206 : vector<32x1xf32> to vector<32x32xf32>
    %208 = arith.subf %204, %207 : vector<32x32xf32>
    %209 = math.exp %208 : vector<32x32xf32>
    %cst_60 = arith.constant dense<0.000000e+00> : vector<32xf32>
    %210 = vector.multi_reduction <add>, %209, %cst_60 [1] : vector<32x32xf32> to vector<32xf32>
    %211 = vector.shape_cast %210 : vector<32xf32> to vector<32x1xf32>
    %212 = tpu.reciprocal %211 {approx = true} : vector<32x1xf32> -> vector<32x1xf32>
    %213 = vector.broadcast %212 : vector<32x1xf32> to vector<32x32xf32>
    %214 = arith.mulf %209, %213 : vector<32x32xf32>
    %cst_61 = arith.constant dense<0.000000e+00> : vector<32x16xf32>
    %215 = tpu.matmul %214, %200, %cst_61 {dimension_numbers = #tpu.dot_dimension_numbers<[1], [0], [0], [1], [0, 0, 1, 1], [], []>} : vector<32x32xf32>, vector<32x16xf32>, vector<32x16xf32> -> vector<32x16xf32>
    %216 = vector.extract_strided_slice %215 {offsets = [0, 0], sizes = [16, 16], strides = [1, 1]} : vector<32x16xf32> to vector<16x16xf32>
    %217 = vector.extract_strided_slice %187 {offsets = [0, 0], sizes = [16, 32], strides = [1, 1]} : vector<32x32xf32> to vector<16x32xf32>
    %cst_62 = arith.constant dense<0.000000e+00> : vector<16x32xf32>
    %218 = tpu.matmul %216, %217, %cst_62 {dimension_numbers = #tpu.dot_dimension_numbers<[1], [0], [0], [1], [0, 0, 1, 1], [], []>} : vector<16x16xf32>, vector<16x32xf32>, vector<16x32xf32> -> vector<16x32xf32>
    %219 = vector.broadcast %179 : vector<1x32xf32> to vector<16x32xf32>
    %220 = arith.addf %219, %218 : vector<16x32xf32>
    %221 = vector.extract_strided_slice %215 {offsets = [16, 0], sizes = [16, 16], strides = [1, 1]} : vector<32x16xf32> to vector<16x16xf32>
    %222 = vector.extract_strided_slice %187 {offsets = [16, 0], sizes = [16, 32], strides = [1, 1]} : vector<32x32xf32> to vector<16x32xf32>
    %cst_63 = arith.constant dense<0.000000e+00> : vector<16x32xf32>
    %223 = tpu.matmul %221, %222, %cst_63 {dimension_numbers = #tpu.dot_dimension_numbers<[1], [0], [0], [1], [0, 0, 1, 1], [], []>} : vector<16x16xf32>, vector<16x32xf32>, vector<16x32xf32> -> vector<16x32xf32>
    %224 = arith.addf %220, %223 : vector<16x32xf32>
    %225 = arith.addf %224, %173 : vector<16x32xf32>
    %cst_64 = arith.constant dense<0.000000e+00> : vector<16xf32>
    %226 = vector.multi_reduction <add>, %225, %cst_64 [1] : vector<16x32xf32> to vector<16xf32>
    %227 = vector.shape_cast %226 : vector<16xf32> to vector<16x1xf32>
    %cst_65 = arith.constant 3.200000e+01 : f32
    %228 = vector.broadcast %cst_65 : f32 to vector<16x1xf32>
    %229 = arith.divf %227, %228 : vector<16x1xf32>
    %230 = vector.broadcast %229 : vector<16x1xf32> to vector<16x32xf32>
    %231 = arith.subf %225, %230 : vector<16x32xf32>
    %232 = arith.mulf %231, %231 : vector<16x32xf32>
    %cst_66 = arith.constant dense<0.000000e+00> : vector<16xf32>
    %233 = vector.multi_reduction <add>, %232, %cst_66 [1] : vector<16x32xf32> to vector<16xf32>
    %234 = vector.shape_cast %233 : vector<16xf32> to vector<16x1xf32>
    %cst_67 = arith.constant 3.200000e+01 : f32
    %235 = vector.broadcast %cst_67 : f32 to vector<16x1xf32>
    %236 = arith.divf %234, %235 : vector<16x1xf32>
    %237 = vector.broadcast %229 : vector<16x1xf32> to vector<16x32xf32>
    %238 = arith.subf %225, %237 : vector<16x32xf32>
    %cst_68 = arith.constant 9.99999996E-13 : f32
    %239 = vector.broadcast %cst_68 : f32 to vector<16x1xf32>
    %240 = arith.addf %236, %239 : vector<16x1xf32>
    %241 = math.rsqrt %240 : vector<16x1xf32>
    %242 = vector.broadcast %241 : vector<16x1xf32> to vector<16x32xf32>
    %243 = arith.mulf %238, %242 : vector<16x32xf32>
    %244 = vector.broadcast %180 : vector<1x32xf32> to vector<16x32xf32>
    %245 = arith.mulf %243, %244 : vector<16x32xf32>
    %246 = vector.broadcast %181 : vector<1x32xf32> to vector<16x32xf32>
    %247 = arith.addf %245, %246 : vector<16x32xf32>
    %cst_69 = arith.constant dense<0.000000e+00> : vector<16x64xf32>
    %248 = tpu.matmul %247, %188, %cst_69 {dimension_numbers = #tpu.dot_dimension_numbers<[1], [0], [0], [1], [0, 0, 1, 1], [], []>} : vector<16x32xf32>, vector<32x64xf32>, vector<16x64xf32> -> vector<16x64xf32>
    %249 = vector.broadcast %182 : vector<1x64xf32> to vector<16x64xf32>
    %250 = arith.addf %248, %249 : vector<16x64xf32>
    %251 = arith.mulf %250, %250 : vector<16x64xf32>
    %252 = arith.mulf %250, %251 : vector<16x64xf32>
    %cst_70 = arith.constant 4.471500e-02 : f32
    %253 = vector.broadcast %cst_70 : f32 to vector<16x64xf32>
    %254 = arith.mulf %253, %252 : vector<16x64xf32>
    %255 = arith.addf %250, %254 : vector<16x64xf32>
    %cst_71 = arith.constant 0.797884583 : f32
    %256 = vector.broadcast %cst_71 : f32 to vector<16x64xf32>
    %257 = arith.mulf %256, %255 : vector<16x64xf32>
    %258 = math.tanh %257 : vector<16x64xf32>
    %cst_72 = arith.constant 1.000000e+00 : f32
    %259 = vector.broadcast %cst_72 : f32 to vector<16x64xf32>
    %260 = arith.addf %259, %258 : vector<16x64xf32>
    %cst_73 = arith.constant 5.000000e-01 : f32
    %261 = vector.broadcast %cst_73 : f32 to vector<16x64xf32>
    %262 = arith.mulf %261, %260 : vector<16x64xf32>
    %263 = arith.mulf %250, %262 : vector<16x64xf32>
    %c1_74 = arith.constant 1 : index
    %c0_75 = arith.constant 0 : index
    %c0_76 = arith.constant 0 : index
    %264 = vector.load %arg5[%c1_74, %c0_75, %c0_76] : memref<2x64x32xf32, #tpu.memory_space<vmem>>, vector<1x64x32xf32>
    %265 = vector.shape_cast %264 : vector<1x64x32xf32> to vector<64x32xf32>
    %cst_77 = arith.constant dense<0.000000e+00> : vector<16x32xf32>
    %266 = tpu.matmul %263, %265, %cst_77 {dimension_numbers = #tpu.dot_dimension_numbers<[1], [0], [0], [1], [0, 0, 1, 1], [], []>} : vector<16x64xf32>, vector<64x32xf32>, vector<16x32xf32> -> vector<16x32xf32>
    %267 = vector.broadcast %183 : vector<1x32xf32> to vector<16x32xf32>
    %268 = arith.addf %266, %267 : vector<16x32xf32>
    %269 = arith.addf %268, %247 : vector<16x32xf32>
    %cst_78 = arith.constant dense<0.000000e+00> : vector<16xf32>
    %270 = vector.multi_reduction <add>, %269, %cst_78 [1] : vector<16x32xf32> to vector<16xf32>
    %271 = vector.shape_cast %270 : vector<16xf32> to vector<16x1xf32>
    %cst_79 = arith.constant 3.200000e+01 : f32
    %272 = vector.broadcast %cst_79 : f32 to vector<16x1xf32>
    %273 = arith.divf %271, %272 : vector<16x1xf32>
    %274 = vector.broadcast %273 : vector<16x1xf32> to vector<16x32xf32>
    %275 = arith.subf %269, %274 : vector<16x32xf32>
    %276 = arith.mulf %275, %275 : vector<16x32xf32>
    %cst_80 = arith.constant dense<0.000000e+00> : vector<16xf32>
    %277 = vector.multi_reduction <add>, %276, %cst_80 [1] : vector<16x32xf32> to vector<16xf32>
    %278 = vector.shape_cast %277 : vector<16xf32> to vector<16x1xf32>
    %cst_81 = arith.constant 3.200000e+01 : f32
    %279 = vector.broadcast %cst_81 : f32 to vector<16x1xf32>
    %280 = arith.divf %278, %279 : vector<16x1xf32>
    %281 = vector.broadcast %273 : vector<16x1xf32> to vector<16x32xf32>
    %282 = arith.subf %269, %281 : vector<16x32xf32>
    %cst_82 = arith.constant 9.99999996E-13 : f32
    %283 = vector.broadcast %cst_82 : f32 to vector<16x1xf32>
    %284 = arith.addf %280, %283 : vector<16x1xf32>
    %285 = math.rsqrt %284 : vector<16x1xf32>
    %286 = vector.broadcast %285 : vector<16x1xf32> to vector<16x32xf32>
    %287 = arith.mulf %282, %286 : vector<16x32xf32>
    %288 = vector.broadcast %184 : vector<1x32xf32> to vector<16x32xf32>
    %289 = arith.mulf %287, %288 : vector<16x32xf32>
    %290 = vector.broadcast %185 : vector<1x32xf32> to vector<16x32xf32>
    %291 = arith.addf %289, %290 : vector<16x32xf32>
    %292 = tpu.iota {dimensions = array<i32: 1>} : vector<2x16xi32>
    %293 = tpu.iota {dimensions = array<i32: 0>} : vector<2x16xi32>
    %c8_i32 = arith.constant 8 : i32
    %294 = vector.broadcast %c8_i32 : i32 to vector<2x16xi32>
    %295 = arith.muli %293, %294 : vector<2x16xi32>
    %296 = arith.cmpi eq, %292, %295 : vector<2x16xi32>
    %297 = arith.extui %296 : vector<2x16xi1> to vector<2x16xi32>
    %298 = arith.sitofp %297 : vector<2x16xi32> to vector<2x16xf32>
    %cst_83 = arith.constant dense<0.000000e+00> : vector<2x32xf32>
    %299 = tpu.matmul %298, %291, %cst_83 {dimension_numbers = #tpu.dot_dimension_numbers<[1], [0], [0], [1], [0, 0, 1, 1], [], []>} : vector<2x16xf32>, vector<16x32xf32>, vector<2x32xf32> -> vector<2x32xf32>
    %c0_84 = arith.constant 0 : index
    %c0_85 = arith.constant 0 : index
    %300 = vector.load %arg7[%c0_84, %c0_85] : memref<40x35xf32, #tpu.memory_space<vmem>>, vector<32x32xf32>
    %c0_86 = arith.constant 0 : index
    %c32_87 = arith.constant 32 : index
    %301 = vector.load %arg7[%c0_86, %c32_87] : memref<40x35xf32, #tpu.memory_space<vmem>>, vector<32x3xf32>
    %c34 = arith.constant 34 : index
    %c0_88 = arith.constant 0 : index
    %302 = vector.load %arg7[%c34, %c0_88] : memref<40x35xf32, #tpu.memory_space<vmem>>, vector<1x32xf32>
    %c35 = arith.constant 35 : index
    %c0_89 = arith.constant 0 : index
    %303 = vector.load %arg7[%c35, %c0_89] : memref<40x35xf32, #tpu.memory_space<vmem>>, vector<1x3xf32>
    %cst_90 = arith.constant dense<0.000000e+00> : vector<2x32xf32>
    %304 = tpu.matmul %299, %300, %cst_90 {dimension_numbers = #tpu.dot_dimension_numbers<[1], [0], [0], [1], [0, 0, 1, 1], [], []>} : vector<2x32xf32>, vector<32x32xf32>, vector<2x32xf32> -> vector<2x32xf32>
    %305 = vector.broadcast %302 : vector<1x32xf32> to vector<2x32xf32>
    %306 = arith.addf %304, %305 : vector<2x32xf32>
    %307 = math.tanh %306 : vector<2x32xf32>
    %cst_91 = arith.constant dense<0.000000e+00> : vector<2x3xf32>
    %308 = tpu.matmul %307, %301, %cst_91 {dimension_numbers = #tpu.dot_dimension_numbers<[1], [0], [0], [1], [0, 0, 1, 1], [], []>} : vector<2x32xf32>, vector<32x3xf32>, vector<2x3xf32> -> vector<2x3xf32>
    %309 = vector.broadcast %303 : vector<1x3xf32> to vector<2x3xf32>
    %310 = arith.addf %308, %309 : vector<2x3xf32>
    %c0_92 = arith.constant 0 : index
    %c0_93 = arith.constant 0 : index
    %311 = vector.load %arg8[%c0_92, %c0_93] : memref<2x3xf32, #tpu.memory_space<vmem>>, vector<2x3xf32>
    tpu.vector_store %arg8[%c0_92, %c0_93], %310 {strides = array<i32>} : memref<2x3xf32, #tpu.memory_space<vmem>>, vector<2x3xf32>,
    %cst_94 = arith.constant dense<0xFF800000> : vector<2xf32>
    %312 = vector.multi_reduction <maximumf>, %310, %cst_94 [1] : vector<2x3xf32> to vector<2xf32>
    %313 = vector.shape_cast %312 : vector<2xf32> to vector<2x1xf32>
    %314 = vector.broadcast %313 : vector<2x1xf32> to vector<2x3xf32>
    %315 = arith.subf %310, %314 : vector<2x3xf32>
    %316 = math.exp %315 : vector<2x3xf32>
    %cst_95 = arith.constant dense<0.000000e+00> : vector<2xf32>
    %317 = vector.multi_reduction <add>, %316, %cst_95 [1] : vector<2x3xf32> to vector<2xf32>
    %318 = vector.shape_cast %317 : vector<2xf32> to vector<2x1xf32>
    %319 = tpu.reciprocal %318 {approx = true} : vector<2x1xf32> -> vector<2x1xf32>
    %320 = vector.broadcast %319 : vector<2x1xf32> to vector<2x3xf32>
    %321 = arith.mulf %316, %320 : vector<2x3xf32>
    %322 = tpu.iota {dimensions = array<i32: 0>} : vector<2x3xi32>
    %323 = tpu.iota {dimensions = array<i32: 1>} : vector<2x3xi32>
    %c0_i32 = arith.constant 0 : i32
    %324 = vector.broadcast %c0_i32 : i32 to vector<2x3xi32>
    %c0_i32_96 = arith.constant 0 : i32
    %325 = vector.broadcast %c0_i32_96 : i32 to vector<2x3xi32>
    %326 = arith.cmpi eq, %322, %325 : vector<2x3xi32>
    %c0_97 = arith.constant 0 : index
    %327 = memref.load %arg2[%c0_97] : memref<2xi32, #tpu.memory_space<smem>>
    %328 = vector.broadcast %327 : i32 to vector<2x3xi32>
    %329 = arith.select %326, %328, %324 : vector<2x3xi1>, vector<2x3xi32>
    %c1_i32 = arith.constant 1 : i32
    %330 = vector.broadcast %c1_i32 : i32 to vector<2x3xi32>
    %331 = arith.cmpi eq, %322, %330 : vector<2x3xi32>
    %c1_98 = arith.constant 1 : index
    %332 = memref.load %arg2[%c1_98] : memref<2xi32, #tpu.memory_space<smem>>
    %333 = vector.broadcast %332 : i32 to vector<2x3xi32>
    %334 = arith.select %331, %333, %329 : vector<2x3xi1>, vector<2x3xi32>
    %335 = arith.cmpi eq, %323, %334 : vector<2x3xi32>
    %336 = arith.extui %335 : vector<2x3xi1> to vector<2x3xi32>
    %337 = arith.sitofp %336 : vector<2x3xi32> to vector<2x3xf32>
    %338 = arith.mulf %321, %337 : vector<2x3xf32>
    %cst_99 = arith.constant dense<0.000000e+00> : vector<2xf32>
    %339 = vector.multi_reduction <add>, %338, %cst_99 [1] : vector<2x3xf32> to vector<2xf32>
    %340 = vector.shape_cast %339 : vector<2xf32> to vector<2x1xf32>
    %cst_100 = arith.constant 9.99999974E-5 : f32
    %341 = vector.broadcast %cst_100 : f32 to vector<2x1xf32>
    %342 = arith.addf %340, %341 : vector<2x1xf32>
    %cst_101 = arith.constant 1.000000e+00 : f32
    %343 = vector.broadcast %cst_101 : f32 to vector<2x1xf32>
    %344 = arith.subf %343, %342 : vector<2x1xf32>
    %345 = arith.mulf %344, %344 : vector<2x1xf32>
    %cst_102 = arith.constant -5.000000e-01 : f32
    %346 = vector.broadcast %cst_102 : f32 to vector<2x1xf32>
    %347 = arith.mulf %346, %345 : vector<2x1xf32>
    %348 = math.log %342 : vector<2x1xf32>
    %349 = arith.mulf %347, %348 : vector<2x1xf32>
    %350 = vector.shape_cast %349 : vector<2x1xf32> to vector<1x2x1xf32>
    %cst_103 = arith.constant dense<0.000000e+00> : vector<1xf32>
    %351 = vector.multi_reduction <add>, %350, %cst_103 [1, 2] : vector<1x2x1xf32> to vector<1xf32>
    %352 = vector.shape_cast %351 : vector<1xf32> to vector<1x1x1xf32>
    %353 = vector.extract %352[0, 0, 0] : f32 from vector<1x1x1xf32>
    %cst_104 = arith.constant 5.000000e-01 : f32
    %354 = arith.mulf %353, %cst_104 : f32
    %c0_105 = arith.constant 0 : index
    %355 = memref.load %arg9[%c0_105] : memref<1xf32, #tpu.memory_space<smem>>
    memref.store %354, %arg9[%c0_105] : memref<1xf32, #tpu.memory_space<smem>>
    return
  }
}

</mosaic_0001>

<llo_original>
// kernel: bert_with_focal_loss.1
$region0: #{bert_with_focal_loss.1}
  #allocation0 [shape = 'u32[]', space=smem, size = 0x4, offset = 0x4, fixed_abs, tag = 'smem constant byte address 0x4 - core index']
  #allocation1 [shape = 'u32[144,128]{1,0:T(1,128)}', space=vmem, size = 0x12000, scoped, tag = 'internal scratch']
  %s0 = inlined_call_operand.vmem [shape: s32[16,1], index: 0, kind: input, shape index: {}]
  %s1 = inlined_call_operand.vmem [shape: s32[1,16], index: 1, kind: input, shape index: {}]
  %s2 = inlined_call_operand.vmem [shape: s32[2], index: 2, kind: input, shape index: {}]
  %s3 = inlined_call_operand.vmem [shape: f32[124,32], index: 3, kind: input, shape index: {}]
  %s4 = inlined_call_operand.vmem [shape: f32[2,32,192], index: 4, kind: input, shape index: {}]
  %s5 = inlined_call_operand.vmem [shape: f32[2,64,32], index: 5, kind: input, shape index: {}]
  %s6 = inlined_call_operand.vmem [shape: f32[2,8,96], index: 6, kind: input, shape index: {}]
  %s7 = inlined_call_operand.vmem [shape: f32[40,35], index: 7, kind: input, shape index: {}]
  %s8 = inlined_call_operand.hbm [shape: f32[2,3], index: 8, kind: output, shape index: {0}]
  %s9 = inlined_call_operand.hbm [shape: f32[1], index: 9, kind: output, shape index: {1}]
  %10 = xla_tuple %s8, %s9
  %s11 = sld [smem:[#allocation0]]
  $region54: #{bert_with_focal_loss.1} parent=0
    _
  %s13 = ssub.s32 1, %s11
  %s14 = scalar_select 0, %s13, %s11
  $region1: #{bert_with_focal_loss.1} parent=0
    #allocation2 [shape = 'u8[512]{0}', space=smem, size = 0x200, scoped, tag = 'input window, operand 2, single buffered']
    #allocation3 [shape = 's32[1]{0}', space=sflag, size = 0x4, scoped, tag = 'scoped memory for bert_with_focal_loss.1']
    #allocation4 [shape = 's32[1]{0}', space=sflag, size = 0x4, scoped, tag = 'scoped memory for bert_with_focal_loss.1']
    #allocation5 [shape = 's32[1]{0}', space=sflag, size = 0x4, scoped, tag = 'scoped memory for bert_with_focal_loss.1']
    #allocation6 [shape = 'u8[1024]{0}', space=vmem, size = 0x400, scoped, tag = 'output window, operand 0, single buffered']
    #allocation7 [shape = 'u8[512]{0}', space=smem, size = 0x200, scoped, tag = 'output window, operand 1, single buffered']
    %15 = vsyncpa [#allocation5], 0
    %16 = vsyncpa [#allocation3], 0
    %17 = vsyncpa [#allocation4], 0
    // Predicated region
    $region2: #{bert_with_focal_loss.1} parent=1 // pred_check
      _
    $region3: #{bert_with_focal_loss.1} parent=1 // pred_check_branch
      %19 = sbr.rel (0) target = $region5
    $region4: #{bert_with_focal_loss.1} parent=1 // pred_region
      _
    $region5: #{bert_with_focal_loss.1} parent=1 // pred_fallthru
      _
    // Predicated region
    $region6: #{bert_with_focal_loss.1} parent=1 // pred_check
      _
    $region7: #{bert_with_focal_loss.1} parent=1 // pred_check_branch
      %21 = sbr.rel (0) target = $region9
    $region8: #{bert_with_focal_loss.1} parent=1 // pred_region
      _
    $region9: #{bert_with_focal_loss.1} parent=1 // pred_fallthru
      _
    // Predicated region
    $region10: #{bert_with_focal_loss.1} parent=1 // pred_check
      _
    $region11: #{bert_with_focal_loss.1} parent=1 // pred_check_branch
      %23 = sbr.rel (0) target = $region13
    $region12: #{bert_with_focal_loss.1} parent=1 // pred_region
      %s25 = ssub.s32 16, 16
      %26 = vsyncadd [#allocation5], %s25
      %s28 = sshll.u32 %s2, 4
      %s29 = int_to_ptr.vmem [resolvable:$true] %s28
      %31 = dma.vmem_to_smem %s29, 16, [#allocation2], [#allocation5]
    $region13: #{bert_with_focal_loss.1} parent=1 // pred_fallthru
      _
    // Predicated region
    $region14: #{bert_with_focal_loss.1} parent=1 // pred_check
      _
    $region15: #{bert_with_focal_loss.1} parent=1 // pred_check_branch
      %33 = sbr.rel (0) target = $region17
    $region16: #{bert_with_focal_loss.1} parent=1 // pred_region
      _
    $region17: #{bert_with_focal_loss.1} parent=1 // pred_fallthru
      _
    // Predicated region
    $region18: #{bert_with_focal_loss.1} parent=1 // pred_check
      _
    $region19: #{bert_with_focal_loss.1} parent=1 // pred_check_branch
      %35 = sbr.rel (0) target = $region21
    $region20: #{bert_with_focal_loss.1} parent=1 // pred_region
      _
    $region21: #{bert_with_focal_loss.1} parent=1 // pred_fallthru
      _
    // Predicated region
    $region22: #{bert_with_focal_loss.1} parent=1 // pred_check
      _
    $region23: #{bert_with_focal_loss.1} parent=1 // pred_check_branch
      %37 = sbr.rel (0) target = $region25
    $region24: #{bert_with_focal_loss.1} parent=1 // pred_region
      _
    $region25: #{bert_with_focal_loss.1} parent=1 // pred_fallthru
      _
    // Predicated region
    $region26: #{bert_with_focal_loss.1} parent=1 // pred_check
      _
    $region27: #{bert_with_focal_loss.1} parent=1 // pred_check_branch
      %39 = sbr.rel (0) target = $region29
    $region28: #{bert_with_focal_loss.1} parent=1 // pred_region
      _
    $region29: #{bert_with_focal_loss.1} parent=1 // pred_fallthru
      _
    // Predicated region
    $region30: #{bert_with_focal_loss.1} parent=1 // pred_check
      _
    $region31: #{bert_with_focal_loss.1} parent=1 // pred_check_branch
      %41 = sbr.rel (0) target = $region33
    $region32: #{bert_with_focal_loss.1} parent=1 // pred_region
      _
    $region33: #{bert_with_focal_loss.1} parent=1 // pred_fallthru
      _
    // Predicated region
    $region34: #{bert_with_focal_loss.1} parent=1 // pred_check
      _
    $region35: #{bert_with_focal_loss.1} parent=1 // pred_check_branch
      %43 = sbr.rel (0) target = $region37
    $region36: #{bert_with_focal_loss.1} parent=1 // pred_region
      %44 = dma.done [#allocation5], 16
    $region37: #{bert_with_focal_loss.1} parent=1 // pred_fallthru
      _
    %45 = sfence
    %v46 = vld [vmem:[%s0] sm:$0xff]
    %v47 = vld [vmem:[%s0 + $0x8] sm:$0xff]
    %v48 = vlaneseq
    %v49 = vand.u32 %v48, 127
    %50 = vset.pattern.permute.xlu0 0
    %51 = vperm.xlu0 %50, %v46
    %v52 = vpop.permute.xlu0 %51
    %53 = vset.pattern.permute.xlu0 0
    %54 = vperm.xlu0 %53, %v47
    %v55 = vpop.permute.xlu0 %54
    %vm56 = vcmp.eq.s32.totalorder %v49, %v52
    %vm57 = vcmp.eq.s32.totalorder %v49, %v55
    %v58 = vsel %vm56, 1, 0
    %v59 = vsel %vm57, 1, 0
    %v60 = vcvt.s32.f32 %v58
    %v61 = vcvt.s32.f32 %v59
    %v62 = vld [vmem:[%s3 + $0x18] sm:$0xff]
    %v63 = vld [vmem:[%s3 + $0x20] sm:$0xff]
    %v64 = vld [vmem:[%s3 + $0x28] sm:$0xff]
    %v65 = vld [vmem:[%s3 + $0x30] sm:$0xff]
    %v66 = vld [vmem:[%s3 + $0x38] sm:$0xff]
    %v67 = vld [vmem:[%s3 + $0x40] sm:$0xff]
    %v68 = vld [vmem:[%s3 + $0x48] sm:$0xff]
    %v69 = vld [vmem:[%s3 + $0x50] sm:$0xff]
    %v70 = vld [vmem:[%s3 + $0x58] sm:$0xff]
    %v71 = vld [vmem:[%s3 + $0x60] sm:$0xff]
    %v72 = vld [vmem:[%s3 + $0x68] sm:$0xff]
    %v73 = vld [vmem:[%s3 + $0x70] sm:$0xff]
    %v74 = vld [vmem:[%s3 + $0x78] sm:$0xf]
    %v75 = vld [vmem:[%s3] sm:$0xff]
    %v76 = vld [vmem:[%s3 + $0x10] sm:$0x1]
    %v77 = vld [vmem:[%s7 + $0x20] sm:$0x1]
    %v78 = vld [vmem:[%s7 + $0x21] sm:$0x1]
    %vm79 = vcmask 818176
    %v81 = vsel %vm79, %v60, 0
    %v84 = vsel %vm79, %v61, 0
    %vm86 = vcmask 1043456
    %v88 = vsel %vm86, %v74, 0
    %90 = vmatprep.subr.mxu0 0.0
    %91 = vmatpush1.msra.mxu0 %v62
    %92 = vmatprep.subr.mxu0 0.0
    %93 = vmatpush1.msra.mxu0 %v63
    %94 = vmatprep.subr.mxu0 0.0
    %95 = vmatpush1.msra.mxu0 %v64
    %96 = vmatprep.subr.mxu0 0.0
    %97 = vmatpush1.msra.mxu0 %v65
    %98 = vmatprep.subr.mxu0 0.0
    %99 = vmatpush1.msra.mxu0 %v66
    %100 = vmatprep.subr.mxu0 0.0
    %101 = vmatpush1.msra.mxu0 %v67
    %102 = vmatprep.subr.mxu0 0.0
    %103 = vmatpush1.msra.mxu0 %v68
    %104 = vmatprep.subr.mxu0 0.0
    %105 = vmatpush1.msra.mxu0 %v69
    %106 = vmatprep.subr.mxu0 0.0
    %107 = vmatpush1.msra.mxu0 %v70
    %108 = vmatprep.subr.mxu0 0.0
    %109 = vmatpush1.msra.mxu0 %v71
    %110 = vmatprep.subr.mxu0 0.0
    %111 = vmatpush1.msra.mxu0 %v72
    %112 = vmatprep.subr.mxu0 0.0
    %113 = vmatpush1.msra.mxu0 %v73
    %114 = vmatprep.subr.mxu0 0.0
    %115 = vmatpush1.msra.mxu0 %v88
    %116 = vmatprep.subr.mxu0 0.0
    %117 = vmatpush1.msra.mxu0 0.0
    %118 = vmatprep.subr.mxu0 0.0
    %119 = vmatpush1.msra.mxu0 0.0
    %120 = vmatprep.subr.mxu0 0.0
    %121 = vmatpush1.msra.mxu0 0.0
    %122 = vmatprep.subr.mxu0 0.0
    %123 = vmatpush1.msra.mxu0 0.0
    %124 = vmatprep.subr.mxu0 0.0
    %125 = vmatpush1.msra.mxu0 0.0
    %126 = vmatprep.subr.mxu0 0.0
    %127 = vmatpush1.msra.mxu0 0.0
    %128 = vmatprep.subr.mxu0 0.0
    %129 = vmatpush1.msra.mxu0 0.0
    %130 = vmatprep.subr.mxu0 0.0
    %131 = vmatpush1.msra.mxu0 0.0
    %132 = vmatprep.subr.mxu0 0.0
    %133 = vmatpush1.msra.mxu0 0.0
    %134 = vmatprep.subr.mxu0 0.0
    %135 = vmatpush1.msra.mxu0 0.0
    %136 = vmatprep.subr.mxu0 0.0
    %137 = vmatpush1.msra.mxu0 0.0
    %138 = vmatprep.subr.mxu0 0.0
    %139 = vmatpush1.msra.mxu0 0.0
    %140 = vmatprep.subr.mxu0 0.0
    %141 = vmatpush1.msra.mxu0 0.0
    %142 = vmatprep.subr.mxu0 0.0
    %143 = vmatpush1.msra.mxu0 0.0
    %144 = vmatprep.subr.mxu0 0.0
    %145 = vmatpush1.msra.mxu0 0.0
    %146 = vmatprep.subr.mxu0 0.0
    %147 = vmatpush1.msra.mxu0 0.0
    %148 = vmatprep.subr.mxu0 0.0
    %149 = vmatpush1.msra.mxu0 0.0
    %150 = vmatprep.subr.mxu0 0.0
    %151 = vmatpush1.msra.mxu0 0.0
    %152 = vmatprep.subr.mxu0 0.0
    %153 = vmatpush1.msra.mxu0 0.0
    %154 = vmatprep.mubr.f32.mxu0 0.0
    %155 = vmatmul.mubr.f32.gmra.mrb[0].mxu0 %v81
    %v156 = vpop.f32.mrb[0].mxu0
    %v157 = vadd.f32 %v75, %v156
    %v158 = vpop.f32.mrb[0].mxu0
    %159 = vmatprep.mubr.f32.mxu0 0.0
    %160 = vmatmul.mubr.f32.gmra.mrb[0].mxu0 %v84
    %v161 = vpop.f32.mrb[0].mxu0
    %v162 = vadd.f32 %v75, %v161
    %v163 = vpop.f32.mrb[0].mxu0
    %164 = vdwg.mxu0
    %v165 = vlaneseq
    %v166 = vshrl.u32 %v165, 7
    %v167 = vsub.s32 0, %v166
    %v168 = vrot.slane %v76, %v167
    %v169 = vadd.f32 %v157, %v168
    %v170 = vadd.f32 %v162, %v168
    %vm171 = vcmask 261120
    %v172 = vsel %vm171, %v169, 0.0
    %173 = vadd.xlane.f32.xlu0 %v172
    %v174 = vpop.xlane.xlu0 %173
    %v175 = vsel %vm171, %v170, 0.0
    %176 = vadd.xlane.f32.xlu0 %v175
    %v177 = vpop.xlane.xlu0 %176
    %v178 = vrcp.pop 32.0
    %v179 = vmul.f32 %v174, %v178
    %v180 = vmul.f32 %v177, %v178
    %v181 = vsub.f32 %v169, %v179
    %v182 = vsub.f32 %v170, %v180
    %v183 = vmul.f32 %v181, %v181
    %v184 = vmul.f32 %v182, %v182
    %v185 = vsel %vm171, %v183, 0.0
    %186 = vadd.xlane.f32.xlu0 %v185
    %v187 = vpop.xlane.xlu0 %186
    %v188 = vsel %vm171, %v184, 0.0
    %189 = vadd.xlane.f32.xlu0 %v188
    %v190 = vpop.xlane.xlu0 %189
    %v191 = vmul.f32 %v187, %v178
    %v192 = vmul.f32 %v190, %v178
    %v193 = vadd.f32 %v191, 1e-12
    %v194 = vadd.f32 %v192, 1e-12
    %v195 = vrsqrt.pop %v193
    %v196 = vrsqrt.pop %v194
    %v197 = vmul.f32 %v181, %v195
    %v198 = vmul.f32 %v182, %v196
    %v199 = vlaneseq
    %v200 = vshrl.u32 %v199, 7
    %v201 = vsub.s32 0, %v200
    %v202 = vrot.slane %v77, %v201
    %v203 = vmul.f32 %v197, %v202
    %v204 = vmul.f32 %v198, %v202
    %v205 = vlaneseq
    %v206 = vshrl.u32 %v205, 7
    %v207 = vsub.s32 0, %v206
    %v208 = vrot.slane %v78, %v207
    %v209 = vadd.f32 %v203, %v208
    %v210 = vadd.f32 %v204, %v208
    %v211 = vld [vmem:[%s1] sm:$0x1]
    %v212 = vcvt.s32.f32 %v211
    %v213 = vsub.f32 1.0, %v212
    %v214 = vmul.f32 %v213, -1e+09
    %v216 = vlaneseq
    %v217 = vshrl.u32 %v216, 7
    %v218 = vsub.s32 0, %v217
    %v219 = vrot.slane %v214, %v218
    %220 = vrot.lane.b32.xlu0 %v219, 16
    %v221 = vpop.permute.xlu0 %220
    %vm223 = vcmask 130048
    %v224 = vsel %vm223, %v214, %v221
    %v225 = vlaneseq
    %v226 = vshrl.u32 %v225, 7
    %v227 = vadd.s32 %v226, 8
    %v228 = vadd.s32 %v226, 16
    %v229 = vadd.s32 %v226, 24
    %v230 = vshra.s32 %v226, 3
    %v231 = vshra.s32 %v227, 3
    %v232 = vshra.s32 %v228, 3
    %v233 = vshra.s32 %v229, 3
    %v234 = vshra.s32 %v49, 3
    %vm235 = vcmp.eq.s32.totalorder %v230, %v234
    %vm236 = vcmp.eq.s32.totalorder %v231, %v234
    %vm237 = vcmp.eq.s32.totalorder %v232, %v234
    %vm238 = vcmp.eq.s32.totalorder %v233, %v234
    %v239 = vlaneseq
    %v240 = vshrl.u32 %v239, 7
    %v241 = vsub.s32 0, %v240
    %v242 = vrot.slane %v224, %v241
    %v243 = vsel %vm235, %v242, -1e+09
    %v244 = vsel %vm236, %v242, -1e+09
    %v245 = vsel %vm237, %v242, -1e+09
    %v246 = vsel %vm238, %v242, -1e+09
    %v247 = vld [vmem:[%s4] sm:$0xff]
    %v248 = vld [vmem:[%s4 + $0x8] sm:$0xff]
    %v249 = vld [vmem:[%s4 + $0x10] sm:$0xff]
    %v250 = vld [vmem:[%s4 + $0x18] sm:$0xff]
    %v251 = vld [vmem:[%s4 + $0x20] sm:$0xff]
    %v252 = vld [vmem:[%s4 + $0x28] sm:$0xff]
    %v253 = vld [vmem:[%s4 + $0x30] sm:$0xff]
    %v254 = vld [vmem:[%s4 + $0x38] sm:$0xff]
    %v255 = vld [vmem:[%s6] sm:$0xff]
    %v256 = vlaneseq
    %v257 = vshrl.u32 %v256, 7
    %v258 = vsub.s32 0, %v257
    %v259 = vrot.slane %v255, %v258
    %v261 = vsel %vm171, %v209, 0
    %v264 = vsel %vm171, %v210, 0
    %266 = vmatprep.subr.mxu0 0.0
    %267 = vmatpush1.msra.mxu0 %v247
    %268 = vmatprep.subr.mxu0 0.0
    %269 = vmatpush1.msra.mxu0 %v249
    %270 = vmatprep.subr.mxu0 0.0
    %271 = vmatpush1.msra.mxu0 %v251
    %272 = vmatprep.subr.mxu0 0.0
    %273 = vmatpush1.msra.mxu0 %v253
    %274 = vmatprep.subr.mxu0 0.0
    %275 = vmatpush1.msra.mxu0 0.0
    %276 = vmatprep.subr.mxu0 0.0
    %277 = vmatpush1.msra.mxu0 0.0
    %278 = vmatprep.subr.mxu0 0.0
    %279 = vmatpush1.msra.mxu0 0.0
    %280 = vmatprep.subr.mxu0 0.0
    %281 = vmatpush1.msra.mxu0 0.0
    %282 = vmatprep.subr.mxu0 0.0
    %283 = vmatpush1.msra.mxu0 0.0
    %284 = vmatprep.subr.mxu0 0.0
    %285 = vmatpush1.msra.mxu0 0.0
    %286 = vmatprep.subr.mxu0 0.0
    %287 = vmatpush1.msra.mxu0 0.0
    %288 = vmatprep.subr.mxu0 0.0
    %289 = vmatpush1.msra.mxu0 0.0
    %290 = vmatprep.subr.mxu0 0.0
    %291 = vmatpush1.msra.mxu0 0.0
    %292 = vmatprep.subr.mxu0 0.0
    %293 = vmatpush1.msra.mxu0 0.0
    %294 = vmatprep.subr.mxu0 0.0
    %295 = vmatpush1.msra.mxu0 0.0
    %296 = vmatprep.subr.mxu0 0.0
    %297 = vmatpush1.msra.mxu0 0.0
    %298 = vmatprep.subr.mxu0 0.0
    %299 = vmatpush1.msra.mxu0 0.0
    %300 = vmatprep.subr.mxu0 0.0
    %301 = vmatpush1.msra.mxu0 0.0
    %302 = vmatprep.subr.mxu0 0.0
    %303 = vmatpush1.msra.mxu0 0.0
    %304 = vmatprep.subr.mxu0 0.0
    %305 = vmatpush1.msra.mxu0 0.0
    %306 = vmatprep.subr.mxu0 0.0
    %307 = vmatpush1.msra.mxu0 0.0
    %308 = vmatprep.subr.mxu0 0.0
    %309 = vmatpush1.msra.mxu0 0.0
    %310 = vmatprep.subr.mxu0 0.0
    %311 = vmatpush1.msra.mxu0 0.0
    %312 = vmatprep.subr.mxu0 0.0
    %313 = vmatpush1.msra.mxu0 0.0
    %314 = vmatprep.subr.mxu0 0.0
    %315 = vmatpush1.msra.mxu0 0.0
    %316 = vmatprep.subr.mxu0 0.0
    %317 = vmatpush1.msra.mxu0 0.0
    %318 = vmatprep.subr.mxu0 0.0
    %319 = vmatpush1.msra.mxu0 0.0
    %320 = vmatprep.subr.mxu0 0.0
    %321 = vmatpush1.msra.mxu0 0.0
    %322 = vmatprep.subr.mxu0 0.0
    %323 = vmatpush1.msra.mxu0 0.0
    %324 = vmatprep.subr.mxu0 0.0
    %325 = vmatpush1.msra.mxu0 0.0
    %326 = vmatprep.subr.mxu0 0.0
    %327 = vmatpush1.msra.mxu0 0.0
    %328 = vmatprep.subr.mxu0 0.0
    %329 = vmatpush1.msra.mxu0 0.0
    %330 = vmatprep.mubr.f32.mxu0 0.0
    %331 = vmatmul.mubr.f32.gmra.mrb[0].mxu0 %v261
    %v332 = vpop.f32.mrb[0].mxu0
    %v333 = vadd.f32 %v259, %v332
    %v334 = vpop.f32.mrb[0].mxu0
    %335 = vmatprep.mubr.f32.mxu0 0.0
    %336 = vmatmul.mubr.f32.gmra.mrb[0].mxu0 %v264
    %v337 = vpop.f32.mrb[0].mxu0
    %v338 = vadd.f32 %v259, %v337
    %v339 = vpop.f32.mrb[0].mxu0
    %340 = vdwg.mxu0
    %343 = vrot.lane.b32.xlu0 %v333, 112
    %v344 = vpop.permute.xlu0 %343
    %345 = vrot.lane.b32.xlu0 %v338, 112
    %v346 = vpop.permute.xlu0 %345
    %347 = vrot.lane.b32.xlu0 %v333, 96
    %v348 = vpop.permute.xlu0 %347
    %349 = vrot.lane.b32.xlu0 %v338, 96
    %v350 = vpop.permute.xlu0 %349
    %351 = vrot.lane.b32.xlu0 %v344, 96
    %v352 = vpop.permute.xlu0 %351
    %353 = vrot.lane.b32.xlu0 %v346, 96
    %v354 = vpop.permute.xlu0 %353
    %v355 = vsel %vm223, %v333, 0
    %v357 = vsel %vm223, %v338, 0
    %v359 = vsel %vm223, %v344, 0
    %v361 = vsel %vm223, %v346, 0
    %v363 = vsel %vm223, %v348, 0
    %v365 = vsel %vm223, %v350, 0
    %v367 = vsel %vm223, %v352, 0
    %v369 = vsel %vm223, %v354, 0
    %371 = vmatprep.subr.mxu0 0.0
    %372 = vmatpush1.xpose.msra.mxu0 %v363
    %373 = vmatprep.subr.mxu0 0.0
    %374 = vmatpush1.xpose.msra.mxu0 %v365
    %375 = vmatprep.subr.mxu0 0.0
    %376 = vmatpush1.xpose.msra.mxu0 %v367
    %377 = vmatprep.subr.mxu0 0.0
    %378 = vmatpush1.xpose.msra.mxu0 %v369
    %379 = vmatprep.subr.mxu0 0.0
    %380 = vmatpush1.xpose.msra.mxu0 0.0
    %381 = vmatprep.subr.mxu0 0.0
    %382 = vmatpush1.xpose.msra.mxu0 0.0
    %383 = vmatprep.subr.mxu0 0.0
    %384 = vmatpush1.xpose.msra.mxu0 0.0
    %385 = vmatprep.subr.mxu0 0.0
    %386 = vmatpush1.xpose.msra.mxu0 0.0
    %387 = vmatprep.subr.mxu0 0.0
    %388 = vmatpush1.xpose.msra.mxu0 0.0
    %389 = vmatprep.subr.mxu0 0.0
    %390 = vmatpush1.xpose.msra.mxu0 0.0
    %391 = vmatprep.subr.mxu0 0.0
    %392 = vmatpush1.xpose.msra.mxu0 0.0
    %393 = vmatprep.subr.mxu0 0.0
    %394 = vmatpush1.xpose.msra.mxu0 0.0
    %395 = vmatprep.subr.mxu0 0.0
    %396 = vmatpush1.xpose.msra.mxu0 0.0
    %397 = vmatprep.subr.mxu0 0.0
    %398 = vmatpush1.xpose.msra.mxu0 0.0
    %399 = vmatprep.subr.mxu0 0.0
    %400 = vmatpush1.xpose.msra.mxu0 0.0
    %401 = vmatprep.subr.mxu0 0.0
    %402 = vmatpush1.xpose.msra.mxu0 0.0
    %403 = vmatprep.subr.mxu0 0.0
    %404 = vmatpush1.xpose.msra.mxu0 0.0
    %405 = vmatprep.subr.mxu0 0.0
    %406 = vmatpush1.xpose.msra.mxu0 0.0
    %407 = vmatprep.subr.mxu0 0.0
    %408 = vmatpush1.xpose.msra.mxu0 0.0
    %409 = vmatprep.subr.mxu0 0.0
    %410 = vmatpush1.xpose.msra.mxu0 0.0
    %411 = vmatprep.subr.mxu0 0.0
    %412 = vmatpush1.xpose.msra.mxu0 0.0
    %413 = vmatprep.subr.mxu0 0.0
    %414 = vmatpush1.xpose.msra.mxu0 0.0
    %415 = vmatprep.subr.mxu0 0.0
    %416 = vmatpush1.xpose.msra.mxu0 0.0
    %417 = vmatprep.subr.mxu0 0.0
    %418 = vmatpush1.xpose.msra.mxu0 0.0
    %419 = vmatprep.subr.mxu0 0.0
    %420 = vmatpush1.xpose.msra.mxu0 0.0
    %421 = vmatprep.subr.mxu0 0.0
    %422 = vmatpush1.xpose.msra.mxu0 0.0
    %423 = vmatprep.subr.mxu0 0.0
    %424 = vmatpush1.xpose.msra.mxu0 0.0
    %425 = vmatprep.subr.mxu0 0.0
    %426 = vmatpush1.xpose.msra.mxu0 0.0
    %427 = vmatprep.subr.mxu0 0.0
    %428 = vmatpush1.xpose.msra.mxu0 0.0
    %429 = vmatprep.subr.mxu0 0.0
    %430 = vmatpush1.xpose.msra.mxu0 0.0
    %431 = vmatprep.subr.mxu0 0.0
    %432 = vmatpush1.xpose.msra.mxu0 0.0
    %433 = vmatprep.subr.mxu0 0.0
    %434 = vmatpush1.xpose.msra.mxu0 0.0
    %435 = vmatprep.mubr.f32.mxu0 0.0
    %436 = vmatmul.mubr.f32.gmra.mrb[0].mxu0 %v355
    %v437 = vpop.f32.mrb[0].mxu0
    %v438 = vadd.f32 0.0, %v437
    %v439 = vpop.f32.mrb[0].mxu0
    %440 = vmatprep.mubr.f32.mxu0 0.0
    %441 = vmatmul.mubr.f32.gmra.mrb[0].mxu0 %v357
    %v442 = vpop.f32.mrb[0].mxu0
    %v443 = vadd.f32 0.0, %v442
    %v444 = vpop.f32.mrb[0].mxu0
    %445 = vmatprep.mubr.f32.mxu0 0.0
    %446 = vmatmul.mubr.f32.gmra.mrb[0].mxu0 %v359
    %v447 = vpop.f32.mrb[0].mxu0
    %v448 = vadd.f32 0.0, %v447
    %v449 = vpop.f32.mrb[0].mxu0
    %450 = vmatprep.mubr.f32.mxu0 0.0
    %451 = vmatmul.mubr.f32.gmra.mrb[0].mxu0 %v361
    %v452 = vpop.f32.mrb[0].mxu0
    %v453 = vadd.f32 0.0, %v452
    %v454 = vpop.f32.mrb[0].mxu0
    %455 = vdwg.mxu0
    %v456 = vmul.f32 %v438, 0.25
    %v457 = vmul.f32 %v443, 0.25
    %v458 = vmul.f32 %v448, 0.25
    %v459 = vmul.f32 %v453, 0.25
    %v460 = vadd.f32 %v456, %v243
    %v461 = vadd.f32 %v457, %v244
    %v462 = vadd.f32 %v458, %v245
    %v463 = vadd.f32 %v459, %v246
    %v464 = vsel %vm171, %v460, -inf
    %465 = vmax.xlane.f32.xlu0 %v464
    %v466 = vpop.xlane.xlu0 %465
    %v467 = vsel %vm171, %v461, -inf
    %468 = vmax.xlane.f32.xlu0 %v467
    %v469 = vpop.xlane.xlu0 %468
    %v470 = vsel %vm171, %v462, -inf
    %471 = vmax.xlane.f32.xlu0 %v470
    %v472 = vpop.xlane.xlu0 %471
    %v473 = vsel %vm171, %v463, -inf
    %474 = vmax.xlane.f32.xlu0 %v473
    %v475 = vpop.xlane.xlu0 %474
    %v476 = vsub.f32 %v460, %v466
    %v477 = vsub.f32 %v461, %v469
    %v478 = vsub.f32 %v462, %v472
    %v479 = vsub.f32 %v463, %v475
    %v480 = vmul.f32 %v476, 1.442695
    %v481 = vpow.pop %v480
    %v482 = vmul.f32 %v477, 1.442695
    %v483 = vpow.pop %v482
    %v484 = vmul.f32 %v478, 1.442695
    %v485 = vpow.pop %v484
    %v486 = vmul.f32 %v479, 1.442695
    %v487 = vpow.pop %v486
    %v488 = vsel %vm171, %v481, 0.0
    %489 = vadd.xlane.f32.xlu0 %v488
    %v490 = vpop.xlane.xlu0 %489
    %v491 = vsel %vm171, %v483, 0.0
    %492 = vadd.xlane.f32.xlu0 %v491
    %v493 = vpop.xlane.xlu0 %492
    %v494 = vsel %vm171, %v485, 0.0
    %495 = vadd.xlane.f32.xlu0 %v494
    %v496 = vpop.xlane.xlu0 %495
    %v497 = vsel %vm171, %v487, 0.0
    %498 = vadd.xlane.f32.xlu0 %v497
    %v499 = vpop.xlane.xlu0 %498
    %v500 = vrcp.pop %v490
    %v501 = vrcp.pop %v493
    %v502 = vrcp.pop %v496
    %v503 = vrcp.pop %v499
    %v504 = vmul.f32 %v481, %v500
    %v505 = vmul.f32 %v483, %v501
    %v506 = vmul.f32 %v485, %v502
    %v507 = vmul.f32 %v487, %v503
    %508 = vrot.lane.b32.xlu0 %v333, 64
    %v509 = vpop.permute.xlu0 %508
    %510 = vrot.lane.b32.xlu0 %v338, 64
    %v511 = vpop.permute.xlu0 %510
    %512 = vrot.lane.b32.xlu0 %v344, 64
    %v513 = vpop.permute.xlu0 %512
    %514 = vrot.lane.b32.xlu0 %v346, 64
    %v515 = vpop.permute.xlu0 %514
    %v521 = vsel %vm171, %v504, 0
    %v524 = vsel %vm171, %v505, 0
    %v527 = vsel %vm171, %v506, 0
    %v530 = vsel %vm171, %v507, 0
    %532 = vmatprep.subr.mxu0 0.0
    %533 = vmatpush1.msra.mxu0 %v509
    %534 = vmatprep.subr.mxu0 0.0
    %535 = vmatpush1.msra.mxu0 %v511
    %536 = vmatprep.subr.mxu0 0.0
    %537 = vmatpush1.msra.mxu0 %v513
    %538 = vmatprep.subr.mxu0 0.0
    %539 = vmatpush1.msra.mxu0 %v515
    %540 = vmatprep.subr.mxu0 0.0
    %541 = vmatpush1.msra.mxu0 0.0
    %542 = vmatprep.subr.mxu0 0.0
    %543 = vmatpush1.msra.mxu0 0.0
    %544 = vmatprep.subr.mxu0 0.0
    %545 = vmatpush1.msra.mxu0 0.0
    %546 = vmatprep.subr.mxu0 0.0
    %547 = vmatpush1.msra.mxu0 0.0
    %548 = vmatprep.subr.mxu0 0.0
    %549 = vmatpush1.msra.mxu0 0.0
    %550 = vmatprep.subr.mxu0 0.0
    %551 = vmatpush1.msra.mxu0 0.0
    %552 = vmatprep.subr.mxu0 0.0
    %553 = vmatpush1.msra.mxu0 0.0
    %554 = vmatprep.subr.mxu0 0.0
    %555 = vmatpush1.msra.mxu0 0.0
    %556 = vmatprep.subr.mxu0 0.0
    %557 = vmatpush1.msra.mxu0 0.0
    %558 = vmatprep.subr.mxu0 0.0
    %559 = vmatpush1.msra.mxu0 0.0
    %560 = vmatprep.subr.mxu0 0.0
    %561 = vmatpush1.msra.mxu0 0.0
    %562 = vmatprep.subr.mxu0 0.0
    %563 = vmatpush1.msra.mxu0 0.0
    %564 = vmatprep.subr.mxu0 0.0
    %565 = vmatpush1.msra.mxu0 0.0
    %566 = vmatprep.subr.mxu0 0.0
    %567 = vmatpush1.msra.mxu0 0.0
    %568 = vmatprep.subr.mxu0 0.0
    %569 = vmatpush1.msra.mxu0 0.0
    %570 = vmatprep.subr.mxu0 0.0
    %571 = vmatpush1.msra.mxu0 0.0
    %572 = vmatprep.subr.mxu0 0.0
    %573 = vmatpush1.msra.mxu0 0.0
    %574 = vmatprep.subr.mxu0 0.0
    %575 = vmatpush1.msra.mxu0 0.0
    %576 = vmatprep.subr.mxu0 0.0
    %577 = vmatpush1.msra.mxu0 0.0
    %578 = vmatprep.subr.mxu0 0.0
    %579 = vmatpush1.msra.mxu0 0.0
    %580 = vmatprep.subr.mxu0 0.0
    %581 = vmatpush1.msra.mxu0 0.0
    %582 = vmatprep.subr.mxu0 0.0
    %583 = vmatpush1.msra.mxu0 0.0
    %584 = vmatprep.subr.mxu0 0.0
    %585 = vmatpush1.msra.mxu0 0.0
    %586 = vmatprep.subr.mxu0 0.0
    %587 = vmatpush1.msra.mxu0 0.0
    %588 = vmatprep.subr.mxu0 0.0
    %589 = vmatpush1.msra.mxu0 0.0
    %590 = vmatprep.subr.mxu0 0.0
    %591 = vmatpush1.msra.mxu0 0.0
    %592 = vmatprep.subr.mxu0 0.0
    %593 = vmatpush1.msra.mxu0 0.0
    %594 = vmatprep.subr.mxu0 0.0
    %595 = vmatpush1.msra.mxu0 0.0
    %596 = vmatprep.mubr.f32.mxu0 0.0
    %597 = vmatmul.mubr.f32.gmra.mrb[0].mxu0 %v521
    %v598 = vpop.f32.mrb[0].mxu0
    %v599 = vadd.f32 0.0, %v598
    %v600 = vpop.f32.mrb[0].mxu0
    %601 = vmatprep.mubr.f32.mxu0 0.0
    %602 = vmatmul.mubr.f32.gmra.mrb[0].mxu0 %v524
    %v603 = vpop.f32.mrb[0].mxu0
    %v604 = vadd.f32 0.0, %v603
    %v605 = vpop.f32.mrb[0].mxu0
    %606 = vmatprep.mubr.f32.mxu0 0.0
    %607 = vmatmul.mubr.f32.gmra.mrb[0].mxu0 %v527
    %v608 = vpop.f32.mrb[0].mxu0
    %v609 = vadd.f32 0.0, %v608
    %v610 = vpop.f32.mrb[0].mxu0
    %611 = vmatprep.mubr.f32.mxu0 0.0
    %612 = vmatmul.mubr.f32.gmra.mrb[0].mxu0 %v530
    %v613 = vpop.f32.mrb[0].mxu0
    %v614 = vadd.f32 0.0, %v613
    %v615 = vpop.f32.mrb[0].mxu0
    %616 = vdwg.mxu0
    %619 = vrot.lane.b32.xlu0 %v247, 32
    %v620 = vpop.permute.xlu0 %619
    %621 = vrot.lane.b32.xlu0 %v249, 32
    %v622 = vpop.permute.xlu0 %621
    %v626 = vsel %vm223, %v599, 0
    %v629 = vsel %vm223, %v604, 0
    %631 = vmatprep.subr.mxu0 0.0
    %632 = vmatpush1.msra.mxu0 %v620
    %633 = vmatprep.subr.mxu0 0.0
    %634 = vmatpush1.msra.mxu0 %v622
    %635 = vmatprep.subr.mxu0 0.0
    %636 = vmatpush1.msra.mxu0 0.0
    %637 = vmatprep.subr.mxu0 0.0
    %638 = vmatpush1.msra.mxu0 0.0
    %639 = vmatprep.subr.mxu0 0.0
    %640 = vmatpush1.msra.mxu0 0.0
    %641 = vmatprep.subr.mxu0 0.0
    %642 = vmatpush1.msra.mxu0 0.0
    %643 = vmatprep.subr.mxu0 0.0
    %644 = vmatpush1.msra.mxu0 0.0
    %645 = vmatprep.subr.mxu0 0.0
    %646 = vmatpush1.msra.mxu0 0.0
    %647 = vmatprep.subr.mxu0 0.0
    %648 = vmatpush1.msra.mxu0 0.0
    %649 = vmatprep.subr.mxu0 0.0
    %650 = vmatpush1.msra.mxu0 0.0
    %651 = vmatprep.subr.mxu0 0.0
    %652 = vmatpush1.msra.mxu0 0.0
    %653 = vmatprep.subr.mxu0 0.0
    %654 = vmatpush1.msra.mxu0 0.0
    %655 = vmatprep.subr.mxu0 0.0
    %656 = vmatpush1.msra.mxu0 0.0
    %657 = vmatprep.subr.mxu0 0.0
    %658 = vmatpush1.msra.mxu0 0.0
    %659 = vmatprep.subr.mxu0 0.0
    %660 = vmatpush1.msra.mxu0 0.0
    %661 = vmatprep.subr.mxu0 0.0
    %662 = vmatpush1.msra.mxu0 0.0
    %663 = vmatprep.subr.mxu0 0.0
    %664 = vmatpush1.msra.mxu0 0.0
    %665 = vmatprep.subr.mxu0 0.0
    %666 = vmatpush1.msra.mxu0 0.0
    %667 = vmatprep.subr.mxu0 0.0
    %668 = vmatpush1.msra.mxu0 0.0
    %669 = vmatprep.subr.mxu0 0.0
    %670 = vmatpush1.msra.mxu0 0.0
    %671 = vmatprep.subr.mxu0 0.0
    %672 = vmatpush1.msra.mxu0 0.0
    %673 = vmatprep.subr.mxu0 0.0
    %674 = vmatpush1.msra.mxu0 0.0
    %675 = vmatprep.subr.mxu0 0.0
    %676 = vmatpush1.msra.mxu0 0.0
    %677 = vmatprep.subr.mxu0 0.0
    %678 = vmatpush1.msra.mxu0 0.0
    %679 = vmatprep.subr.mxu0 0.0
    %680 = vmatpush1.msra.mxu0 0.0
    %681 = vmatprep.subr.mxu0 0.0
    %682 = vmatpush1.msra.mxu0 0.0
    %683 = vmatprep.subr.mxu0 0.0
    %684 = vmatpush1.msra.mxu0 0.0
    %685 = vmatprep.subr.mxu0 0.0
    %686 = vmatpush1.msra.mxu0 0.0
    %687 = vmatprep.subr.mxu0 0.0
    %688 = vmatpush1.msra.mxu0 0.0
    %689 = vmatprep.subr.mxu0 0.0
    %690 = vmatpush1.msra.mxu0 0.0
    %691 = vmatprep.subr.mxu0 0.0
    %692 = vmatpush1.msra.mxu0 0.0
    %693 = vmatprep.subr.mxu0 0.0
    %694 = vmatpush1.msra.mxu0 0.0
    %695 = vmatprep.mubr.f32.mxu0 0.0
    %696 = vmatmul.mubr.f32.gmra.mrb[0].mxu0 %v626
    %v697 = vpop.f32.mrb[0].mxu0
    %v698 = vadd.f32 0.0, %v697
    %v699 = vpop.f32.mrb[0].mxu0
    %700 = vmatprep.mubr.f32.mxu0 0.0
    %701 = vmatmul.mubr.f32.gmra.mrb[0].mxu0 %v629
    %v702 = vpop.f32.mrb[0].mxu0
    %v703 = vadd.f32 0.0, %v702
    %v704 = vpop.f32.mrb[0].mxu0
    %705 = vdwg.mxu0
    %v706 = vlaneseq
    %v707 = vshrl.u32 %v706, 7
    %v708 = vsub.s32 1, %v707
    %v709 = vrot.slane %v255, %v708
    %v710 = vadd.f32 %v709, %v698
    %v711 = vadd.f32 %v709, %v703
    %714 = vrot.lane.b32.xlu0 %v251, 32
    %v715 = vpop.permute.xlu0 %714
    %716 = vrot.lane.b32.xlu0 %v253, 32
    %v717 = vpop.permute.xlu0 %716
    %v721 = vsel %vm223, %v609, 0
    %v724 = vsel %vm223, %v614, 0
    %726 = vmatprep.subr.mxu0 0.0
    %727 = vmatpush1.msra.mxu0 %v715
    %728 = vmatprep.subr.mxu0 0.0
    %729 = vmatpush1.msra.mxu0 %v717
    %730 = vmatprep.subr.mxu0 0.0
    %731 = vmatpush1.msra.mxu0 0.0
    %732 = vmatprep.subr.mxu0 0.0
    %733 = vmatpush1.msra.mxu0 0.0
    %734 = vmatprep.subr.mxu0 0.0
    %735 = vmatpush1.msra.mxu0 0.0
    %736 = vmatprep.subr.mxu0 0.0
    %737 = vmatpush1.msra.mxu0 0.0
    %738 = vmatprep.subr.mxu0 0.0
    %739 = vmatpush1.msra.mxu0 0.0
    %740 = vmatprep.subr.mxu0 0.0
    %741 = vmatpush1.msra.mxu0 0.0
    %742 = vmatprep.subr.mxu0 0.0
    %743 = vmatpush1.msra.mxu0 0.0
    %744 = vmatprep.subr.mxu0 0.0
    %745 = vmatpush1.msra.mxu0 0.0
    %746 = vmatprep.subr.mxu0 0.0
    %747 = vmatpush1.msra.mxu0 0.0
    %748 = vmatprep.subr.mxu0 0.0
    %749 = vmatpush1.msra.mxu0 0.0
    %750 = vmatprep.subr.mxu0 0.0
    %751 = vmatpush1.msra.mxu0 0.0
    %752 = vmatprep.subr.mxu0 0.0
    %753 = vmatpush1.msra.mxu0 0.0
    %754 = vmatprep.subr.mxu0 0.0
    %755 = vmatpush1.msra.mxu0 0.0
    %756 = vmatprep.subr.mxu0 0.0
    %757 = vmatpush1.msra.mxu0 0.0
    %758 = vmatprep.subr.mxu0 0.0
    %759 = vmatpush1.msra.mxu0 0.0
    %760 = vmatprep.subr.mxu0 0.0
    %761 = vmatpush1.msra.mxu0 0.0
    %762 = vmatprep.subr.mxu0 0.0
    %763 = vmatpush1.msra.mxu0 0.0
    %764 = vmatprep.subr.mxu0 0.0
    %765 = vmatpush1.msra.mxu0 0.0
    %766 = vmatprep.subr.mxu0 0.0
    %767 = vmatpush1.msra.mxu0 0.0
    %768 = vmatprep.subr.mxu0 0.0
    %769 = vmatpush1.msra.mxu0 0.0
    %770 = vmatprep.subr.mxu0 0.0
    %771 = vmatpush1.msra.mxu0 0.0
    %772 = vmatprep.subr.mxu0 0.0
    %773 = vmatpush1.msra.mxu0 0.0
    %774 = vmatprep.subr.mxu0 0.0
    %775 = vmatpush1.msra.mxu0 0.0
    %776 = vmatprep.subr.mxu0 0.0
    %777 = vmatpush1.msra.mxu0 0.0
    %778 = vmatprep.subr.mxu0 0.0
    %779 = vmatpush1.msra.mxu0 0.0
    %780 = vmatprep.subr.mxu0 0.0
    %781 = vmatpush1.msra.mxu0 0.0
    %782 = vmatprep.subr.mxu0 0.0
    %783 = vmatpush1.msra.mxu0 0.0
    %784 = vmatprep.subr.mxu0 0.0
    %785 = vmatpush1.msra.mxu0 0.0
    %786 = vmatprep.subr.mxu0 0.0
    %787 = vmatpush1.msra.mxu0 0.0
    %788 = vmatprep.subr.mxu0 0.0
    %789 = vmatpush1.msra.mxu0 0.0
    %790 = vmatprep.mubr.f32.mxu0 0.0
    %791 = vmatmul.mubr.f32.gmra.mrb[0].mxu0 %v721
    %v792 = vpop.f32.mrb[0].mxu0
    %v793 = vadd.f32 0.0, %v792
    %v794 = vpop.f32.mrb[0].mxu0
    %795 = vmatprep.mubr.f32.mxu0 0.0
    %796 = vmatmul.mubr.f32.gmra.mrb[0].mxu0 %v724
    %v797 = vpop.f32.mrb[0].mxu0
    %v798 = vadd.f32 0.0, %v797
    %v799 = vpop.f32.mrb[0].mxu0
    %800 = vdwg.mxu0
    %v801 = vadd.f32 %v710, %v793
    %v802 = vadd.f32 %v711, %v798
    %v803 = vadd.f32 %v801, %v209
    %v804 = vadd.f32 %v802, %v210
    %v805 = vsel %vm171, %v803, 0.0
    %806 = vadd.xlane.f32.xlu0 %v805
    %v807 = vpop.xlane.xlu0 %806
    %v808 = vsel %vm171, %v804, 0.0
    %809 = vadd.xlane.f32.xlu0 %v808
    %v810 = vpop.xlane.xlu0 %809
    %v811 = vmul.f32 %v807, %v178
    %v812 = vmul.f32 %v810, %v178
    %v813 = vsub.f32 %v803, %v811
    %v814 = vsub.f32 %v804, %v812
    %v815 = vmul.f32 %v813, %v813
    %v816 = vmul.f32 %v814, %v814
    %v817 = vsel %vm171, %v815, 0.0
    %818 = vadd.xlane.f32.xlu0 %v817
    %v819 = vpop.xlane.xlu0 %818
    %v820 = vsel %vm171, %v816, 0.0
    %821 = vadd.xlane.f32.xlu0 %v820
    %v822 = vpop.xlane.xlu0 %821
    %v823 = vmul.f32 %v819, %v178
    %v824 = vmul.f32 %v822, %v178
    %v825 = vadd.f32 %v823, 1e-12
    %v826 = vadd.f32 %v824, 1e-12
    %v827 = vrsqrt.pop %v825
    %v828 = vrsqrt.pop %v826
    %v829 = vmul.f32 %v813, %v827
    %v830 = vmul.f32 %v814, %v828
    %v831 = vlaneseq
    %v832 = vshrl.u32 %v831, 7
    %v833 = vsub.s32 2, %v832
    %v834 = vrot.slane %v255, %v833
    %v835 = vmul.f32 %v829, %v834
    %v836 = vmul.f32 %v830, %v834
    %v837 = vlaneseq
    %v838 = vshrl.u32 %v837, 7
    %v839 = vsub.s32 3, %v838
    %v840 = vrot.slane %v255, %v839
    %v841 = vadd.f32 %v835, %v840
    %v842 = vadd.f32 %v836, %v840
    %v843 = vlaneseq
    %v844 = vshrl.u32 %v843, 7
    %v845 = vsub.s32 4, %v844
    %v846 = vrot.slane %v255, %v845
    %v848 = vsel %vm171, %v841, 0
    %v851 = vsel %vm171, %v842, 0
    %853 = vmatprep.subr.mxu0 0.0
    %854 = vmatpush1.msra.mxu0 %v248
    %855 = vmatprep.subr.mxu0 0.0
    %856 = vmatpush1.msra.mxu0 %v250
    %857 = vmatprep.subr.mxu0 0.0
    %858 = vmatpush1.msra.mxu0 %v252
    %859 = vmatprep.subr.mxu0 0.0
    %860 = vmatpush1.msra.mxu0 %v254
    %861 = vmatprep.subr.mxu0 0.0
    %862 = vmatpush1.msra.mxu0 0.0
    %863 = vmatprep.subr.mxu0 0.0
    %864 = vmatpush1.msra.mxu0 0.0
    %865 = vmatprep.subr.mxu0 0.0
    %866 = vmatpush1.msra.mxu0 0.0
    %867 = vmatprep.subr.mxu0 0.0
    %868 = vmatpush1.msra.mxu0 0.0
    %869 = vmatprep.subr.mxu0 0.0
    %870 = vmatpush1.msra.mxu0 0.0
    %871 = vmatprep.subr.mxu0 0.0
    %872 = vmatpush1.msra.mxu0 0.0
    %873 = vmatprep.subr.mxu0 0.0
    %874 = vmatpush1.msra.mxu0 0.0
    %875 = vmatprep.subr.mxu0 0.0
    %876 = vmatpush1.msra.mxu0 0.0
    %877 = vmatprep.subr.mxu0 0.0
    %878 = vmatpush1.msra.mxu0 0.0
    %879 = vmatprep.subr.mxu0 0.0
    %880 = vmatpush1.msra.mxu0 0.0
    %881 = vmatprep.subr.mxu0 0.0
    %882 = vmatpush1.msra.mxu0 0.0
    %883 = vmatprep.subr.mxu0 0.0
    %884 = vmatpush1.msra.mxu0 0.0
    %885 = vmatprep.subr.mxu0 0.0
    %886 = vmatpush1.msra.mxu0 0.0
    %887 = vmatprep.subr.mxu0 0.0
    %888 = vmatpush1.msra.mxu0 0.0
    %889 = vmatprep.subr.mxu0 0.0
    %890 = vmatpush1.msra.mxu0 0.0
    %891 = vmatprep.subr.mxu0 0.0
    %892 = vmatpush1.msra.mxu0 0.0
    %893 = vmatprep.subr.mxu0 0.0
    %894 = vmatpush1.msra.mxu0 0.0
    %895 = vmatprep.subr.mxu0 0.0
    %896 = vmatpush1.msra.mxu0 0.0
    %897 = vmatprep.subr.mxu0 0.0
    %898 = vmatpush1.msra.mxu0 0.0
    %899 = vmatprep.subr.mxu0 0.0
    %900 = vmatpush1.msra.mxu0 0.0
    %901 = vmatprep.subr.mxu0 0.0
    %902 = vmatpush1.msra.mxu0 0.0
    %903 = vmatprep.subr.mxu0 0.0
    %904 = vmatpush1.msra.mxu0 0.0
    %905 = vmatprep.subr.mxu0 0.0
    %906 = vmatpush1.msra.mxu0 0.0
    %907 = vmatprep.subr.mxu0 0.0
    %908 = vmatpush1.msra.mxu0 0.0
    %909 = vmatprep.subr.mxu0 0.0
    %910 = vmatpush1.msra.mxu0 0.0
    %911 = vmatprep.subr.mxu0 0.0
    %912 = vmatpush1.msra.mxu0 0.0
    %913 = vmatprep.subr.mxu0 0.0
    %914 = vmatpush1.msra.mxu0 0.0
    %915 = vmatprep.subr.mxu0 0.0
    %916 = vmatpush1.msra.mxu0 0.0
    %917 = vmatprep.mubr.f32.mxu0 0.0
    %918 = vmatmul.mubr.f32.gmra.mrb[0].mxu0 %v848
    %v919 = vpop.f32.mrb[0].mxu0
    %v920 = vadd.f32 %v846, %v919
    %v921 = vpop.f32.mrb[0].mxu0
    %922 = vmatprep.mubr.f32.mxu0 0.0
    %923 = vmatmul.mubr.f32.gmra.mrb[0].mxu0 %v851
    %v924 = vpop.f32.mrb[0].mxu0
    %v925 = vadd.f32 %v846, %v924
    %v926 = vpop.f32.mrb[0].mxu0
    %927 = vdwg.mxu0
    %v928 = vmul.f32 %v920, %v920
    %v929 = vmul.f32 %v925, %v925
    %v930 = vmul.f32 %v920, %v928
    %v931 = vmul.f32 %v925, %v929
    %v932 = vmul.f32 %v930, 0.044715
    %v933 = vmul.f32 %v931, 0.044715
    %v934 = vadd.f32 %v920, %v932
    %v935 = vadd.f32 %v925, %v933
    %v936 = vmul.f32 %v934, 0.7978846
    %v937 = vmul.f32 %v935, 0.7978846
    %v938 = vtanh.pop %v936
    %v939 = vtanh.pop %v937
    %v940 = vadd.f32 %v938, 1.0
    %v941 = vadd.f32 %v939, 1.0
    %v942 = vmul.f32 %v940, 0.5
    %v943 = vmul.f32 %v941, 0.5
    %v944 = vmul.f32 %v920, %v942
    %v945 = vmul.f32 %v925, %v943
    %v946 = vld [vmem:[%s5] sm:$0xff]
    %v947 = vld [vmem:[%s5 + $0x8] sm:$0xff]
    %v948 = vld [vmem:[%s5 + $0x10] sm:$0xff]
    %v949 = vld [vmem:[%s5 + $0x18] sm:$0xff]
    %v950 = vld [vmem:[%s5 + $0x20] sm:$0xff]
    %v951 = vld [vmem:[%s5 + $0x28] sm:$0xff]
    %v952 = vld [vmem:[%s5 + $0x30] sm:$0xff]
    %v953 = vld [vmem:[%s5 + $0x38] sm:$0xff]
    %v954 = vlaneseq
    %v955 = vshrl.u32 %v954, 7
    %v956 = vsub.s32 5, %v955
    %v957 = vrot.slane %v255, %v956
    %vm958 = vcmask 523264
    %v960 = vsel %vm958, %v944, 0
    %v963 = vsel %vm958, %v945, 0
    %965 = vmatprep.subr.mxu0 0.0
    %966 = vmatpush1.msra.mxu0 %v946
    %967 = vmatprep.subr.mxu0 0.0
    %968 = vmatpush1.msra.mxu0 %v947
    %969 = vmatprep.subr.mxu0 0.0
    %970 = vmatpush1.msra.mxu0 %v948
    %971 = vmatprep.subr.mxu0 0.0
    %972 = vmatpush1.msra.mxu0 %v949
    %973 = vmatprep.subr.mxu0 0.0
    %974 = vmatpush1.msra.mxu0 %v950
    %975 = vmatprep.subr.mxu0 0.0
    %976 = vmatpush1.msra.mxu0 %v951
    %977 = vmatprep.subr.mxu0 0.0
    %978 = vmatpush1.msra.mxu0 %v952
    %979 = vmatprep.subr.mxu0 0.0
    %980 = vmatpush1.msra.mxu0 %v953
    %981 = vmatprep.subr.mxu0 0.0
    %982 = vmatpush1.msra.mxu0 0.0
    %983 = vmatprep.subr.mxu0 0.0
    %984 = vmatpush1.msra.mxu0 0.0
    %985 = vmatprep.subr.mxu0 0.0
    %986 = vmatpush1.msra.mxu0 0.0
    %987 = vmatprep.subr.mxu0 0.0
    %988 = vmatpush1.msra.mxu0 0.0
    %989 = vmatprep.subr.mxu0 0.0
    %990 = vmatpush1.msra.mxu0 0.0
    %991 = vmatprep.subr.mxu0 0.0
    %992 = vmatpush1.msra.mxu0 0.0
    %993 = vmatprep.subr.mxu0 0.0
    %994 = vmatpush1.msra.mxu0 0.0
    %995 = vmatprep.subr.mxu0 0.0
    %996 = vmatpush1.msra.mxu0 0.0
    %997 = vmatprep.subr.mxu0 0.0
    %998 = vmatpush1.msra.mxu0 0.0
    %999 = vmatprep.subr.mxu0 0.0
    %1000 = vmatpush1.msra.mxu0 0.0
    %1001 = vmatprep.subr.mxu0 0.0
    %1002 = vmatpush1.msra.mxu0 0.0
    %1003 = vmatprep.subr.mxu0 0.0
    %1004 = vmatpush1.msra.mxu0 0.0
    %1005 = vmatprep.subr.mxu0 0.0
    %1006 = vmatpush1.msra.mxu0 0.0
    %1007 = vmatprep.subr.mxu0 0.0
    %1008 = vmatpush1.msra.mxu0 0.0
    %1009 = vmatprep.subr.mxu0 0.0
    %1010 = vmatpush1.msra.mxu0 0.0
    %1011 = vmatprep.subr.mxu0 0.0
    %1012 = vmatpush1.msra.mxu0 0.0
    %1013 = vmatprep.subr.mxu0 0.0
    %1014 = vmatpush1.msra.mxu0 0.0
    %1015 = vmatprep.subr.mxu0 0.0
    %1016 = vmatpush1.msra.mxu0 0.0
    %1017 = vmatprep.subr.mxu0 0.0
    %1018 = vmatpush1.msra.mxu0 0.0
    %1019 = vmatprep.subr.mxu0 0.0
    %1020 = vmatpush1.msra.mxu0 0.0
    %1021 = vmatprep.subr.mxu0 0.0
    %1022 = vmatpush1.msra.mxu0 0.0
    %1023 = vmatprep.subr.mxu0 0.0
    %1024 = vmatpush1.msra.mxu0 0.0
    %1025 = vmatprep.subr.mxu0 0.0
    %1026 = vmatpush1.msra.mxu0 0.0
    %1027 = vmatprep.subr.mxu0 0.0
    %1028 = vmatpush1.msra.mxu0 0.0
    %1029 = vmatprep.mubr.f32.mxu0 0.0
    %1030 = vmatmul.mubr.f32.gmra.mrb[0].mxu0 %v960
    %v1031 = vpop.f32.mrb[0].mxu0
    %v1032 = vadd.f32 %v957, %v1031
    %v1033 = vpop.f32.mrb[0].mxu0
    %1034 = vmatprep.mubr.f32.mxu0 0.0
    %1035 = vmatmul.mubr.f32.gmra.mrb[0].mxu0 %v963
    %v1036 = vpop.f32.mrb[0].mxu0
    %v1037 = vadd.f32 %v957, %v1036
    %v1038 = vpop.f32.mrb[0].mxu0
    %1039 = vdwg.mxu0
    %v1040 = vadd.f32 %v1032, %v841
    %v1041 = vadd.f32 %v1037, %v842
    %v1042 = vsel %vm171, %v1040, 0.0
    %1043 = vadd.xlane.f32.xlu0 %v1042
    %v1044 = vpop.xlane.xlu0 %1043
    %v1045 = vsel %vm171, %v1041, 0.0
    %1046 = vadd.xlane.f32.xlu0 %v1045
    %v1047 = vpop.xlane.xlu0 %1046
    %v1048 = vmul.f32 %v1044, %v178
    %v1049 = vmul.f32 %v1047, %v178
    %v1050 = vsub.f32 %v1040, %v1048
    %v1051 = vsub.f32 %v1041, %v1049
    %v1052 = vmul.f32 %v1050, %v1050
    %v1053 = vmul.f32 %v1051, %v1051
    %v1054 = vsel %vm171, %v1052, 0.0
    %1055 = vadd.xlane.f32.xlu0 %v1054
    %v1056 = vpop.xlane.xlu0 %1055
    %v1057 = vsel %vm171, %v1053, 0.0
    %1058 = vadd.xlane.f32.xlu0 %v1057
    %v1059 = vpop.xlane.xlu0 %1058
    %v1060 = vmul.f32 %v1056, %v178
    %v1061 = vmul.f32 %v1059, %v178
    %v1062 = vadd.f32 %v1060, 1e-12
    %v1063 = vadd.f32 %v1061, 1e-12
    %v1064 = vrsqrt.pop %v1062
    %v1065 = vrsqrt.pop %v1063
    %v1066 = vmul.f32 %v1050, %v1064
    %v1067 = vmul.f32 %v1051, %v1065
    %v1068 = vlaneseq
    %v1069 = vshrl.u32 %v1068, 7
    %v1070 = vsub.s32 6, %v1069
    %v1071 = vrot.slane %v255, %v1070
    %v1072 = vmul.f32 %v1066, %v1071
    %v1073 = vmul.f32 %v1067, %v1071
    %v1074 = vlaneseq
    %v1075 = vshrl.u32 %v1074, 7
    %v1076 = vsub.s32 7, %v1075
    %v1077 = vrot.slane %v255, %v1076
    %v1078 = vadd.f32 %v1072, %v1077
    %v1079 = vadd.f32 %v1073, %v1077
    %s1080 = scalar_lea.vmem %s4, 64
    %v1081 = vld [vmem:[%s1080] sm:$0xff]
    %v1082 = vld [vmem:[%s1080 + $0x8] sm:$0xff]
    %v1083 = vld [vmem:[%s1080 + $0x10] sm:$0xff]
    %v1084 = vld [vmem:[%s1080 + $0x18] sm:$0xff]
    %v1085 = vld [vmem:[%s1080 + $0x20] sm:$0xff]
    %v1086 = vld [vmem:[%s1080 + $0x28] sm:$0xff]
    %v1087 = vld [vmem:[%s1080 + $0x30] sm:$0xff]
    %v1088 = vld [vmem:[%s1080 + $0x38] sm:$0xff]
    %s1089 = scalar_lea.vmem %s6, 8
    %v1090 = vld [vmem:[%s1089] sm:$0xff]
    %v1091 = vlaneseq
    %v1092 = vshrl.u32 %v1091, 7
    %v1093 = vsub.s32 0, %v1092
    %v1094 = vrot.slane %v1090, %v1093
    %v1096 = vsel %vm171, %v1078, 0
    %v1099 = vsel %vm171, %v1079, 0
    %1101 = vmatprep.subr.mxu0 0.0
    %1102 = vmatpush1.msra.mxu0 %v1081
    %1103 = vmatprep.subr.mxu0 0.0
    %1104 = vmatpush1.msra.mxu0 %v1083
    %1105 = vmatprep.subr.mxu0 0.0
    %1106 = vmatpush1.msra.mxu0 %v1085
    %1107 = vmatprep.subr.mxu0 0.0
    %1108 = vmatpush1.msra.mxu0 %v1087
    %1109 = vmatprep.subr.mxu0 0.0
    %1110 = vmatpush1.msra.mxu0 0.0
    %1111 = vmatprep.subr.mxu0 0.0
    %1112 = vmatpush1.msra.mxu0 0.0
    %1113 = vmatprep.subr.mxu0 0.0
    %1114 = vmatpush1.msra.mxu0 0.0
    %1115 = vmatprep.subr.mxu0 0.0
    %1116 = vmatpush1.msra.mxu0 0.0
    %1117 = vmatprep.subr.mxu0 0.0
    %1118 = vmatpush1.msra.mxu0 0.0
    %1119 = vmatprep.subr.mxu0 0.0
    %1120 = vmatpush1.msra.mxu0 0.0
    %1121 = vmatprep.subr.mxu0 0.0
    %1122 = vmatpush1.msra.mxu0 0.0
    %1123 = vmatprep.subr.mxu0 0.0
    %1124 = vmatpush1.msra.mxu0 0.0
    %1125 = vmatprep.subr.mxu0 0.0
    %1126 = vmatpush1.msra.mxu0 0.0
    %1127 = vmatprep.subr.mxu0 0.0
    %1128 = vmatpush1.msra.mxu0 0.0
    %1129 = vmatprep.subr.mxu0 0.0
    %1130 = vmatpush1.msra.mxu0 0.0
    %1131 = vmatprep.subr.mxu0 0.0
    %1132 = vmatpush1.msra.mxu0 0.0
    %1133 = vmatprep.subr.mxu0 0.0
    %1134 = vmatpush1.msra.mxu0 0.0
    %1135 = vmatprep.subr.mxu0 0.0
    %1136 = vmatpush1.msra.mxu0 0.0
    %1137 = vmatprep.subr.mxu0 0.0
    %1138 = vmatpush1.msra.mxu0 0.0
    %1139 = vmatprep.subr.mxu0 0.0
    %1140 = vmatpush1.msra.mxu0 0.0
    %1141 = vmatprep.subr.mxu0 0.0
    %1142 = vmatpush1.msra.mxu0 0.0
    %1143 = vmatprep.subr.mxu0 0.0
    %1144 = vmatpush1.msra.mxu0 0.0
    %1145 = vmatprep.subr.mxu0 0.0
    %1146 = vmatpush1.msra.mxu0 0.0
    %1147 = vmatprep.subr.mxu0 0.0
    %1148 = vmatpush1.msra.mxu0 0.0
    %1149 = vmatprep.subr.mxu0 0.0
    %1150 = vmatpush1.msra.mxu0 0.0
    %1151 = vmatprep.subr.mxu0 0.0
    %1152 = vmatpush1.msra.mxu0 0.0
    %1153 = vmatprep.subr.mxu0 0.0
    %1154 = vmatpush1.msra.mxu0 0.0
    %1155 = vmatprep.subr.mxu0 0.0
    %1156 = vmatpush1.msra.mxu0 0.0
    %1157 = vmatprep.subr.mxu0 0.0
    %1158 = vmatpush1.msra.mxu0 0.0
    %1159 = vmatprep.subr.mxu0 0.0
    %1160 = vmatpush1.msra.mxu0 0.0
    %1161 = vmatprep.subr.mxu0 0.0
    %1162 = vmatpush1.msra.mxu0 0.0
    %1163 = vmatprep.subr.mxu0 0.0
    %1164 = vmatpush1.msra.mxu0 0.0
    %1165 = vmatprep.mubr.f32.mxu0 0.0
    %1166 = vmatmul.mubr.f32.gmra.mrb[0].mxu0 %v1096
    %v1167 = vpop.f32.mrb[0].mxu0
    %v1168 = vadd.f32 %v1094, %v1167
    %v1169 = vpop.f32.mrb[0].mxu0
    %1170 = vmatprep.mubr.f32.mxu0 0.0
    %1171 = vmatmul.mubr.f32.gmra.mrb[0].mxu0 %v1099
    %v1172 = vpop.f32.mrb[0].mxu0
    %v1173 = vadd.f32 %v1094, %v1172
    %v1174 = vpop.f32.mrb[0].mxu0
    %1175 = vdwg.mxu0
    %1178 = vrot.lane.b32.xlu0 %v1168, 112
    %v1179 = vpop.permute.xlu0 %1178
    %1180 = vrot.lane.b32.xlu0 %v1173, 112
    %v1181 = vpop.permute.xlu0 %1180
    %1182 = vrot.lane.b32.xlu0 %v1168, 96
    %v1183 = vpop.permute.xlu0 %1182
    %1184 = vrot.lane.b32.xlu0 %v1173, 96
    %v1185 = vpop.permute.xlu0 %1184
    %1186 = vrot.lane.b32.xlu0 %v1179, 96
    %v1187 = vpop.permute.xlu0 %1186
    %1188 = vrot.lane.b32.xlu0 %v1181, 96
    %v1189 = vpop.permute.xlu0 %1188
    %v1190 = vsel %vm223, %v1168, 0
    %v1192 = vsel %vm223, %v1173, 0
    %v1194 = vsel %vm223, %v1179, 0
    %v1196 = vsel %vm223, %v1181, 0
    %v1198 = vsel %vm223, %v1183, 0
    %v1200 = vsel %vm223, %v1185, 0
    %v1202 = vsel %vm223, %v1187, 0
    %v1204 = vsel %vm223, %v1189, 0
    %1206 = vmatprep.subr.mxu0 0.0
    %1207 = vmatpush1.xpose.msra.mxu0 %v1198
    %1208 = vmatprep.subr.mxu0 0.0
    %1209 = vmatpush1.xpose.msra.mxu0 %v1200
    %1210 = vmatprep.subr.mxu0 0.0
    %1211 = vmatpush1.xpose.msra.mxu0 %v1202
    %1212 = vmatprep.subr.mxu0 0.0
    %1213 = vmatpush1.xpose.msra.mxu0 %v1204
    %1214 = vmatprep.subr.mxu0 0.0
    %1215 = vmatpush1.xpose.msra.mxu0 0.0
    %1216 = vmatprep.subr.mxu0 0.0
    %1217 = vmatpush1.xpose.msra.mxu0 0.0
    %1218 = vmatprep.subr.mxu0 0.0
    %1219 = vmatpush1.xpose.msra.mxu0 0.0
    %1220 = vmatprep.subr.mxu0 0.0
    %1221 = vmatpush1.xpose.msra.mxu0 0.0
    %1222 = vmatprep.subr.mxu0 0.0
    %1223 = vmatpush1.xpose.msra.mxu0 0.0
    %1224 = vmatprep.subr.mxu0 0.0
    %1225 = vmatpush1.xpose.msra.mxu0 0.0
    %1226 = vmatprep.subr.mxu0 0.0
    %1227 = vmatpush1.xpose.msra.mxu0 0.0
    %1228 = vmatprep.subr.mxu0 0.0
    %1229 = vmatpush1.xpose.msra.mxu0 0.0
    %1230 = vmatprep.subr.mxu0 0.0
    %1231 = vmatpush1.xpose.msra.mxu0 0.0
    %1232 = vmatprep.subr.mxu0 0.0
    %1233 = vmatpush1.xpose.msra.mxu0 0.0
    %1234 = vmatprep.subr.mxu0 0.0
    %1235 = vmatpush1.xpose.msra.mxu0 0.0
    %1236 = vmatprep.subr.mxu0 0.0
    %1237 = vmatpush1.xpose.msra.mxu0 0.0
    %1238 = vmatprep.subr.mxu0 0.0
    %1239 = vmatpush1.xpose.msra.mxu0 0.0
    %1240 = vmatprep.subr.mxu0 0.0
    %1241 = vmatpush1.xpose.msra.mxu0 0.0
    %1242 = vmatprep.subr.mxu0 0.0
    %1243 = vmatpush1.xpose.msra.mxu0 0.0
    %1244 = vmatprep.subr.mxu0 0.0
    %1245 = vmatpush1.xpose.msra.mxu0 0.0
    %1246 = vmatprep.subr.mxu0 0.0
    %1247 = vmatpush1.xpose.msra.mxu0 0.0
    %1248 = vmatprep.subr.mxu0 0.0
    %1249 = vmatpush1.xpose.msra.mxu0 0.0
    %1250 = vmatprep.subr.mxu0 0.0
    %1251 = vmatpush1.xpose.msra.mxu0 0.0
    %1252 = vmatprep.subr.mxu0 0.0
    %1253 = vmatpush1.xpose.msra.mxu0 0.0
    %1254 = vmatprep.subr.mxu0 0.0
    %1255 = vmatpush1.xpose.msra.mxu0 0.0
    %1256 = vmatprep.subr.mxu0 0.0
    %1257 = vmatpush1.xpose.msra.mxu0 0.0
    %1258 = vmatprep.subr.mxu0 0.0
    %1259 = vmatpush1.xpose.msra.mxu0 0.0
    %1260 = vmatprep.subr.mxu0 0.0
    %1261 = vmatpush1.xpose.msra.mxu0 0.0
    %1262 = vmatprep.subr.mxu0 0.0
    %1263 = vmatpush1.xpose.msra.mxu0 0.0
    %1264 = vmatprep.subr.mxu0 0.0
    %1265 = vmatpush1.xpose.msra.mxu0 0.0
    %1266 = vmatprep.subr.mxu0 0.0
    %1267 = vmatpush1.xpose.msra.mxu0 0.0
    %1268 = vmatprep.subr.mxu0 0.0
    %1269 = vmatpush1.xpose.msra.mxu0 0.0
    %1270 = vmatprep.mubr.f32.mxu0 0.0
    %1271 = vmatmul.mubr.f32.gmra.mrb[0].mxu0 %v1190
    %v1272 = vpop.f32.mrb[0].mxu0
    %v1273 = vadd.f32 0.0, %v1272
    %v1274 = vpop.f32.mrb[0].mxu0
    %1275 = vmatprep.mubr.f32.mxu0 0.0
    %1276 = vmatmul.mubr.f32.gmra.mrb[0].mxu0 %v1192
    %v1277 = vpop.f32.mrb[0].mxu0
    %v1278 = vadd.f32 0.0, %v1277
    %v1279 = vpop.f32.mrb[0].mxu0
    %1280 = vmatprep.mubr.f32.mxu0 0.0
    %1281 = vmatmul.mubr.f32.gmra.mrb[0].mxu0 %v1194
    %v1282 = vpop.f32.mrb[0].mxu0
    %v1283 = vadd.f32 0.0, %v1282
    %v1284 = vpop.f32.mrb[0].mxu0
    %1285 = vmatprep.mubr.f32.mxu0 0.0
    %1286 = vmatmul.mubr.f32.gmra.mrb[0].mxu0 %v1196
    %v1287 = vpop.f32.mrb[0].mxu0
    %v1288 = vadd.f32 0.0, %v1287
    %v1289 = vpop.f32.mrb[0].mxu0
    %1290 = vdwg.mxu0
    %v1291 = vmul.f32 %v1273, 0.25
    %v1292 = vmul.f32 %v1278, 0.25
    %v1293 = vmul.f32 %v1283, 0.25
    %v1294 = vmul.f32 %v1288, 0.25
    %v1295 = vadd.f32 %v1291, %v243
    %v1296 = vadd.f32 %v1292, %v244
    %v1297 = vadd.f32 %v1293, %v245
    %v1298 = vadd.f32 %v1294, %v246
    %v1299 = vsel %vm171, %v1295, -inf
    %1300 = vmax.xlane.f32.xlu0 %v1299
    %v1301 = vpop.xlane.xlu0 %1300
    %v1302 = vsel %vm171, %v1296, -inf
    %1303 = vmax.xlane.f32.xlu0 %v1302
    %v1304 = vpop.xlane.xlu0 %1303
    %v1305 = vsel %vm171, %v1297, -inf
    %1306 = vmax.xlane.f32.xlu0 %v1305
    %v1307 = vpop.xlane.xlu0 %1306
    %v1308 = vsel %vm171, %v1298, -inf
    %1309 = vmax.xlane.f32.xlu0 %v1308
    %v1310 = vpop.xlane.xlu0 %1309
    %v1311 = vsub.f32 %v1295, %v1301
    %v1312 = vsub.f32 %v1296, %v1304
    %v1313 = vsub.f32 %v1297, %v1307
    %v1314 = vsub.f32 %v1298, %v1310
    %v1315 = vmul.f32 %v1311, 1.442695
    %v1316 = vpow.pop %v1315
    %v1317 = vmul.f32 %v1312, 1.442695
    %v1318 = vpow.pop %v1317
    %v1319 = vmul.f32 %v1313, 1.442695
    %v1320 = vpow.pop %v1319
    %v1321 = vmul.f32 %v1314, 1.442695
    %v1322 = vpow.pop %v1321
    %v1323 = vsel %vm171, %v1316, 0.0
    %1324 = vadd.xlane.f32.xlu0 %v1323
    %v1325 = vpop.xlane.xlu0 %1324
    %v1326 = vsel %vm171, %v1318, 0.0
    %1327 = vadd.xlane.f32.xlu0 %v1326
    %v1328 = vpop.xlane.xlu0 %1327
    %v1329 = vsel %vm171, %v1320, 0.0
    %1330 = vadd.xlane.f32.xlu0 %v1329
    %v1331 = vpop.xlane.xlu0 %1330
    %v1332 = vsel %vm171, %v1322, 0.0
    %1333 = vadd.xlane.f32.xlu0 %v1332
    %v1334 = vpop.xlane.xlu0 %1333
    %v1335 = vrcp.pop %v1325
    %v1336 = vrcp.pop %v1328
    %v1337 = vrcp.pop %v1331
    %v1338 = vrcp.pop %v1334
    %v1339 = vmul.f32 %v1316, %v1335
    %v1340 = vmul.f32 %v1318, %v1336
    %v1341 = vmul.f32 %v1320, %v1337
    %v1342 = vmul.f32 %v1322, %v1338
    %1343 = vrot.lane.b32.xlu0 %v1168, 64
    %v1344 = vpop.permute.xlu0 %1343
    %1345 = vrot.lane.b32.xlu0 %v1173, 64
    %v1346 = vpop.permute.xlu0 %1345
    %1347 = vrot.lane.b32.xlu0 %v1179, 64
    %v1348 = vpop.permute.xlu0 %1347
    %1349 = vrot.lane.b32.xlu0 %v1181, 64
    %v1350 = vpop.permute.xlu0 %1349
    %v1356 = vsel %vm171, %v1339, 0
    %v1359 = vsel %vm171, %v1340, 0
    %v1362 = vsel %vm171, %v1341, 0
    %v1365 = vsel %vm171, %v1342, 0
    %1367 = vmatprep.subr.mxu0 0.0
    %1368 = vmatpush1.msra.mxu0 %v1344
    %1369 = vmatprep.subr.mxu0 0.0
    %1370 = vmatpush1.msra.mxu0 %v1346
    %1371 = vmatprep.subr.mxu0 0.0
    %1372 = vmatpush1.msra.mxu0 %v1348
    %1373 = vmatprep.subr.mxu0 0.0
    %1374 = vmatpush1.msra.mxu0 %v1350
    %1375 = vmatprep.subr.mxu0 0.0
    %1376 = vmatpush1.msra.mxu0 0.0
    %1377 = vmatprep.subr.mxu0 0.0
    %1378 = vmatpush1.msra.mxu0 0.0
    %1379 = vmatprep.subr.mxu0 0.0
    %1380 = vmatpush1.msra.mxu0 0.0
    %1381 = vmatprep.subr.mxu0 0.0
    %1382 = vmatpush1.msra.mxu0 0.0
    %1383 = vmatprep.subr.mxu0 0.0
    %1384 = vmatpush1.msra.mxu0 0.0
    %1385 = vmatprep.subr.mxu0 0.0
    %1386 = vmatpush1.msra.mxu0 0.0
    %1387 = vmatprep.subr.mxu0 0.0
    %1388 = vmatpush1.msra.mxu0 0.0
    %1389 = vmatprep.subr.mxu0 0.0
    %1390 = vmatpush1.msra.mxu0 0.0
    %1391 = vmatprep.subr.mxu0 0.0
    %1392 = vmatpush1.msra.mxu0 0.0
    %1393 = vmatprep.subr.mxu0 0.0
    %1394 = vmatpush1.msra.mxu0 0.0
    %1395 = vmatprep.subr.mxu0 0.0
    %1396 = vmatpush1.msra.mxu0 0.0
    %1397 = vmatprep.subr.mxu0 0.0
    %1398 = vmatpush1.msra.mxu0 0.0
    %1399 = vmatprep.subr.mxu0 0.0
    %1400 = vmatpush1.msra.mxu0 0.0
    %1401 = vmatprep.subr.mxu0 0.0
    %1402 = vmatpush1.msra.mxu0 0.0
    %1403 = vmatprep.subr.mxu0 0.0
    %1404 = vmatpush1.msra.mxu0 0.0
    %1405 = vmatprep.subr.mxu0 0.0
    %1406 = vmatpush1.msra.mxu0 0.0
    %1407 = vmatprep.subr.mxu0 0.0
    %1408 = vmatpush1.msra.mxu0 0.0
    %1409 = vmatprep.subr.mxu0 0.0
    %1410 = vmatpush1.msra.mxu0 0.0
    %1411 = vmatprep.subr.mxu0 0.0
    %1412 = vmatpush1.msra.mxu0 0.0
    %1413 = vmatprep.subr.mxu0 0.0
    %1414 = vmatpush1.msra.mxu0 0.0
    %1415 = vmatprep.subr.mxu0 0.0
    %1416 = vmatpush1.msra.mxu0 0.0
    %1417 = vmatprep.subr.mxu0 0.0
    %1418 = vmatpush1.msra.mxu0 0.0
    %1419 = vmatprep.subr.mxu0 0.0
    %1420 = vmatpush1.msra.mxu0 0.0
    %1421 = vmatprep.subr.mxu0 0.0
    %1422 = vmatpush1.msra.mxu0 0.0
    %1423 = vmatprep.subr.mxu0 0.0
    %1424 = vmatpush1.msra.mxu0 0.0
    %1425 = vmatprep.subr.mxu0 0.0
    %1426 = vmatpush1.msra.mxu0 0.0
    %1427 = vmatprep.subr.mxu0 0.0
    %1428 = vmatpush1.msra.mxu0 0.0
    %1429 = vmatprep.subr.mxu0 0.0
    %1430 = vmatpush1.msra.mxu0 0.0
    %1431 = vmatprep.mubr.f32.mxu0 0.0
    %1432 = vmatmul.mubr.f32.gmra.mrb[0].mxu0 %v1356
    %v1433 = vpop.f32.mrb[0].mxu0
    %v1434 = vadd.f32 0.0, %v1433
    %v1435 = vpop.f32.mrb[0].mxu0
    %1436 = vmatprep.mubr.f32.mxu0 0.0
    %1437 = vmatmul.mubr.f32.gmra.mrb[0].mxu0 %v1359
    %v1438 = vpop.f32.mrb[0].mxu0
    %v1439 = vadd.f32 0.0, %v1438
    %v1440 = vpop.f32.mrb[0].mxu0
    %1441 = vmatprep.mubr.f32.mxu0 0.0
    %1442 = vmatmul.mubr.f32.gmra.mrb[0].mxu0 %v1362
    %v1443 = vpop.f32.mrb[0].mxu0
    %v1444 = vadd.f32 0.0, %v1443
    %v1445 = vpop.f32.mrb[0].mxu0
    %1446 = vmatprep.mubr.f32.mxu0 0.0
    %1447 = vmatmul.mubr.f32.gmra.mrb[0].mxu0 %v1365
    %v1448 = vpop.f32.mrb[0].mxu0
    %v1449 = vadd.f32 0.0, %v1448
    %v1450 = vpop.f32.mrb[0].mxu0
    %1451 = vdwg.mxu0
    %1454 = vrot.lane.b32.xlu0 %v1081, 32
    %v1455 = vpop.permute.xlu0 %1454
    %1456 = vrot.lane.b32.xlu0 %v1083, 32
    %v1457 = vpop.permute.xlu0 %1456
    %v1461 = vsel %vm223, %v1434, 0
    %v1464 = vsel %vm223, %v1439, 0
    %1466 = vmatprep.subr.mxu0 0.0
    %1467 = vmatpush1.msra.mxu0 %v1455
    %1468 = vmatprep.subr.mxu0 0.0
    %1469 = vmatpush1.msra.mxu0 %v1457
    %1470 = vmatprep.subr.mxu0 0.0
    %1471 = vmatpush1.msra.mxu0 0.0
    %1472 = vmatprep.subr.mxu0 0.0
    %1473 = vmatpush1.msra.mxu0 0.0
    %1474 = vmatprep.subr.mxu0 0.0
    %1475 = vmatpush1.msra.mxu0 0.0
    %1476 = vmatprep.subr.mxu0 0.0
    %1477 = vmatpush1.msra.mxu0 0.0
    %1478 = vmatprep.subr.mxu0 0.0
    %1479 = vmatpush1.msra.mxu0 0.0
    %1480 = vmatprep.subr.mxu0 0.0
    %1481 = vmatpush1.msra.mxu0 0.0
    %1482 = vmatprep.subr.mxu0 0.0
    %1483 = vmatpush1.msra.mxu0 0.0
    %1484 = vmatprep.subr.mxu0 0.0
    %1485 = vmatpush1.msra.mxu0 0.0
    %1486 = vmatprep.subr.mxu0 0.0
    %1487 = vmatpush1.msra.mxu0 0.0
    %1488 = vmatprep.subr.mxu0 0.0
    %1489 = vmatpush1.msra.mxu0 0.0
    %1490 = vmatprep.subr.mxu0 0.0
    %1491 = vmatpush1.msra.mxu0 0.0
    %1492 = vmatprep.subr.mxu0 0.0
    %1493 = vmatpush1.msra.mxu0 0.0
    %1494 = vmatprep.subr.mxu0 0.0
    %1495 = vmatpush1.msra.mxu0 0.0
    %1496 = vmatprep.subr.mxu0 0.0
    %1497 = vmatpush1.msra.mxu0 0.0
    %1498 = vmatprep.subr.mxu0 0.0
    %1499 = vmatpush1.msra.mxu0 0.0
    %1500 = vmatprep.subr.mxu0 0.0
    %1501 = vmatpush1.msra.mxu0 0.0
    %1502 = vmatprep.subr.mxu0 0.0
    %1503 = vmatpush1.msra.mxu0 0.0
    %1504 = vmatprep.subr.mxu0 0.0
    %1505 = vmatpush1.msra.mxu0 0.0
    %1506 = vmatprep.subr.mxu0 0.0
    %1507 = vmatpush1.msra.mxu0 0.0
    %1508 = vmatprep.subr.mxu0 0.0
    %1509 = vmatpush1.msra.mxu0 0.0
    %1510 = vmatprep.subr.mxu0 0.0
    %1511 = vmatpush1.msra.mxu0 0.0
    %1512 = vmatprep.subr.mxu0 0.0
    %1513 = vmatpush1.msra.mxu0 0.0
    %1514 = vmatprep.subr.mxu0 0.0
    %1515 = vmatpush1.msra.mxu0 0.0
    %1516 = vmatprep.subr.mxu0 0.0
    %1517 = vmatpush1.msra.mxu0 0.0
    %1518 = vmatprep.subr.mxu0 0.0
    %1519 = vmatpush1.msra.mxu0 0.0
    %1520 = vmatprep.subr.mxu0 0.0
    %1521 = vmatpush1.msra.mxu0 0.0
    %1522 = vmatprep.subr.mxu0 0.0
    %1523 = vmatpush1.msra.mxu0 0.0
    %1524 = vmatprep.subr.mxu0 0.0
    %1525 = vmatpush1.msra.mxu0 0.0
    %1526 = vmatprep.subr.mxu0 0.0
    %1527 = vmatpush1.msra.mxu0 0.0
    %1528 = vmatprep.subr.mxu0 0.0
    %1529 = vmatpush1.msra.mxu0 0.0
    %1530 = vmatprep.mubr.f32.mxu0 0.0
    %1531 = vmatmul.mubr.f32.gmra.mrb[0].mxu0 %v1461
    %v1532 = vpop.f32.mrb[0].mxu0
    %v1533 = vadd.f32 0.0, %v1532
    %v1534 = vpop.f32.mrb[0].mxu0
    %1535 = vmatprep.mubr.f32.mxu0 0.0
    %1536 = vmatmul.mubr.f32.gmra.mrb[0].mxu0 %v1464
    %v1537 = vpop.f32.mrb[0].mxu0
    %v1538 = vadd.f32 0.0, %v1537
    %v1539 = vpop.f32.mrb[0].mxu0
    %1540 = vdwg.mxu0
    %v1541 = vlaneseq
    %v1542 = vshrl.u32 %v1541, 7
    %v1543 = vsub.s32 1, %v1542
    %v1544 = vrot.slane %v1090, %v1543
    %v1545 = vadd.f32 %v1544, %v1533
    %v1546 = vadd.f32 %v1544, %v1538
    %1549 = vrot.lane.b32.xlu0 %v1085, 32
    %v1550 = vpop.permute.xlu0 %1549
    %1551 = vrot.lane.b32.xlu0 %v1087, 32
    %v1552 = vpop.permute.xlu0 %1551
    %v1556 = vsel %vm223, %v1444, 0
    %v1559 = vsel %vm223, %v1449, 0
    %1561 = vmatprep.subr.mxu0 0.0
    %1562 = vmatpush1.msra.mxu0 %v1550
    %1563 = vmatprep.subr.mxu0 0.0
    %1564 = vmatpush1.msra.mxu0 %v1552
    %1565 = vmatprep.subr.mxu0 0.0
    %1566 = vmatpush1.msra.mxu0 0.0
    %1567 = vmatprep.subr.mxu0 0.0
    %1568 = vmatpush1.msra.mxu0 0.0
    %1569 = vmatprep.subr.mxu0 0.0
    %1570 = vmatpush1.msra.mxu0 0.0
    %1571 = vmatprep.subr.mxu0 0.0
    %1572 = vmatpush1.msra.mxu0 0.0
    %1573 = vmatprep.subr.mxu0 0.0
    %1574 = vmatpush1.msra.mxu0 0.0
    %1575 = vmatprep.subr.mxu0 0.0
    %1576 = vmatpush1.msra.mxu0 0.0
    %1577 = vmatprep.subr.mxu0 0.0
    %1578 = vmatpush1.msra.mxu0 0.0
    %1579 = vmatprep.subr.mxu0 0.0
    %1580 = vmatpush1.msra.mxu0 0.0
    %1581 = vmatprep.subr.mxu0 0.0
    %1582 = vmatpush1.msra.mxu0 0.0
    %1583 = vmatprep.subr.mxu0 0.0
    %1584 = vmatpush1.msra.mxu0 0.0
    %1585 = vmatprep.subr.mxu0 0.0
    %1586 = vmatpush1.msra.mxu0 0.0
    %1587 = vmatprep.subr.mxu0 0.0
    %1588 = vmatpush1.msra.mxu0 0.0
    %1589 = vmatprep.subr.mxu0 0.0
    %1590 = vmatpush1.msra.mxu0 0.0
    %1591 = vmatprep.subr.mxu0 0.0
    %1592 = vmatpush1.msra.mxu0 0.0
    %1593 = vmatprep.subr.mxu0 0.0
    %1594 = vmatpush1.msra.mxu0 0.0
    %1595 = vmatprep.subr.mxu0 0.0
    %1596 = vmatpush1.msra.mxu0 0.0
    %1597 = vmatprep.subr.mxu0 0.0
    %1598 = vmatpush1.msra.mxu0 0.0
    %1599 = vmatprep.subr.mxu0 0.0
    %1600 = vmatpush1.msra.mxu0 0.0
    %1601 = vmatprep.subr.mxu0 0.0
    %1602 = vmatpush1.msra.mxu0 0.0
    %1603 = vmatprep.subr.mxu0 0.0
    %1604 = vmatpush1.msra.mxu0 0.0
    %1605 = vmatprep.subr.mxu0 0.0
    %1606 = vmatpush1.msra.mxu0 0.0
    %1607 = vmatprep.subr.mxu0 0.0
    %1608 = vmatpush1.msra.mxu0 0.0
    %1609 = vmatprep.subr.mxu0 0.0
    %1610 = vmatpush1.msra.mxu0 0.0
    %1611 = vmatprep.subr.mxu0 0.0
    %1612 = vmatpush1.msra.mxu0 0.0
    %1613 = vmatprep.subr.mxu0 0.0
    %1614 = vmatpush1.msra.mxu0 0.0
    %1615 = vmatprep.subr.mxu0 0.0
    %1616 = vmatpush1.msra.mxu0 0.0
    %1617 = vmatprep.subr.mxu0 0.0
    %1618 = vmatpush1.msra.mxu0 0.0
    %1619 = vmatprep.subr.mxu0 0.0
    %1620 = vmatpush1.msra.mxu0 0.0
    %1621 = vmatprep.subr.mxu0 0.0
    %1622 = vmatpush1.msra.mxu0 0.0
    %1623 = vmatprep.subr.mxu0 0.0
    %1624 = vmatpush1.msra.mxu0 0.0
    %1625 = vmatprep.mubr.f32.mxu0 0.0
    %1626 = vmatmul.mubr.f32.gmra.mrb[0].mxu0 %v1556
    %v1627 = vpop.f32.mrb[0].mxu0
    %v1628 = vadd.f32 0.0, %v1627
    %v1629 = vpop.f32.mrb[0].mxu0
    %1630 = vmatprep.mubr.f32.mxu0 0.0
    %1631 = vmatmul.mubr.f32.gmra.mrb[0].mxu0 %v1559
    %v1632 = vpop.f32.mrb[0].mxu0
    %v1633 = vadd.f32 0.0, %v1632
    %v1634 = vpop.f32.mrb[0].mxu0
    %1635 = vdwg.mxu0
    %v1636 = vadd.f32 %v1545, %v1628
    %v1637 = vadd.f32 %v1546, %v1633
    %v1638 = vadd.f32 %v1636, %v1078
    %v1639 = vadd.f32 %v1637, %v1079
    %v1640 = vsel %vm171, %v1638, 0.0
    %1641 = vadd.xlane.f32.xlu0 %v1640
    %v1642 = vpop.xlane.xlu0 %1641
    %v1643 = vsel %vm171, %v1639, 0.0
    %1644 = vadd.xlane.f32.xlu0 %v1643
    %v1645 = vpop.xlane.xlu0 %1644
    %v1646 = vmul.f32 %v1642, %v178
    %v1647 = vmul.f32 %v1645, %v178
    %v1648 = vsub.f32 %v1638, %v1646
    %v1649 = vsub.f32 %v1639, %v1647
    %v1650 = vmul.f32 %v1648, %v1648
    %v1651 = vmul.f32 %v1649, %v1649
    %v1652 = vsel %vm171, %v1650, 0.0
    %1653 = vadd.xlane.f32.xlu0 %v1652
    %v1654 = vpop.xlane.xlu0 %1653
    %v1655 = vsel %vm171, %v1651, 0.0
    %1656 = vadd.xlane.f32.xlu0 %v1655
    %v1657 = vpop.xlane.xlu0 %1656
    %v1658 = vmul.f32 %v1654, %v178
    %v1659 = vmul.f32 %v1657, %v178
    %v1660 = vadd.f32 %v1658, 1e-12
    %v1661 = vadd.f32 %v1659, 1e-12
    %v1662 = vrsqrt.pop %v1660
    %v1663 = vrsqrt.pop %v1661
    %v1664 = vmul.f32 %v1648, %v1662
    %v1665 = vmul.f32 %v1649, %v1663
    %v1666 = vlaneseq
    %v1667 = vshrl.u32 %v1666, 7
    %v1668 = vsub.s32 2, %v1667
    %v1669 = vrot.slane %v1090, %v1668
    %v1670 = vmul.f32 %v1664, %v1669
    %v1671 = vmul.f32 %v1665, %v1669
    %v1672 = vlaneseq
    %v1673 = vshrl.u32 %v1672, 7
    %v1674 = vsub.s32 3, %v1673
    %v1675 = vrot.slane %v1090, %v1674
    %v1676 = vadd.f32 %v1670, %v1675
    %v1677 = vadd.f32 %v1671, %v1675
    %v1678 = vlaneseq
    %v1679 = vshrl.u32 %v1678, 7
    %v1680 = vsub.s32 4, %v1679
    %v1681 = vrot.slane %v1090, %v1680
    %v1683 = vsel %vm171, %v1676, 0
    %v1686 = vsel %vm171, %v1677, 0
    %1688 = vmatprep.subr.mxu0 0.0
    %1689 = vmatpush1.msra.mxu0 %v1082
    %1690 = vmatprep.subr.mxu0 0.0
    %1691 = vmatpush1.msra.mxu0 %v1084
    %1692 = vmatprep.subr.mxu0 0.0
    %1693 = vmatpush1.msra.mxu0 %v1086
    %1694 = vmatprep.subr.mxu0 0.0
    %1695 = vmatpush1.msra.mxu0 %v1088
    %1696 = vmatprep.subr.mxu0 0.0
    %1697 = vmatpush1.msra.mxu0 0.0
    %1698 = vmatprep.subr.mxu0 0.0
    %1699 = vmatpush1.msra.mxu0 0.0
    %1700 = vmatprep.subr.mxu0 0.0
    %1701 = vmatpush1.msra.mxu0 0.0
    %1702 = vmatprep.subr.mxu0 0.0
    %1703 = vmatpush1.msra.mxu0 0.0
    %1704 = vmatprep.subr.mxu0 0.0
    %1705 = vmatpush1.msra.mxu0 0.0
    %1706 = vmatprep.subr.mxu0 0.0
    %1707 = vmatpush1.msra.mxu0 0.0
    %1708 = vmatprep.subr.mxu0 0.0
    %1709 = vmatpush1.msra.mxu0 0.0
    %1710 = vmatprep.subr.mxu0 0.0
    %1711 = vmatpush1.msra.mxu0 0.0
    %1712 = vmatprep.subr.mxu0 0.0
    %1713 = vmatpush1.msra.mxu0 0.0
    %1714 = vmatprep.subr.mxu0 0.0
    %1715 = vmatpush1.msra.mxu0 0.0
    %1716 = vmatprep.subr.mxu0 0.0
    %1717 = vmatpush1.msra.mxu0 0.0
    %1718 = vmatprep.subr.mxu0 0.0
    %1719 = vmatpush1.msra.mxu0 0.0
    %1720 = vmatprep.subr.mxu0 0.0
    %1721 = vmatpush1.msra.mxu0 0.0
    %1722 = vmatprep.subr.mxu0 0.0
    %1723 = vmatpush1.msra.mxu0 0.0
    %1724 = vmatprep.subr.mxu0 0.0
    %1725 = vmatpush1.msra.mxu0 0.0
    %1726 = vmatprep.subr.mxu0 0.0
    %1727 = vmatpush1.msra.mxu0 0.0
    %1728 = vmatprep.subr.mxu0 0.0
    %1729 = vmatpush1.msra.mxu0 0.0
    %1730 = vmatprep.subr.mxu0 0.0
    %1731 = vmatpush1.msra.mxu0 0.0
    %1732 = vmatprep.subr.mxu0 0.0
    %1733 = vmatpush1.msra.mxu0 0.0
    %1734 = vmatprep.subr.mxu0 0.0
    %1735 = vmatpush1.msra.mxu0 0.0
    %1736 = vmatprep.subr.mxu0 0.0
    %1737 = vmatpush1.msra.mxu0 0.0
    %1738 = vmatprep.subr.mxu0 0.0
    %1739 = vmatpush1.msra.mxu0 0.0
    %1740 = vmatprep.subr.mxu0 0.0
    %1741 = vmatpush1.msra.mxu0 0.0
    %1742 = vmatprep.subr.mxu0 0.0
    %1743 = vmatpush1.msra.mxu0 0.0
    %1744 = vmatprep.subr.mxu0 0.0
    %1745 = vmatpush1.msra.mxu0 0.0
    %1746 = vmatprep.subr.mxu0 0.0
    %1747 = vmatpush1.msra.mxu0 0.0
    %1748 = vmatprep.subr.mxu0 0.0
    %1749 = vmatpush1.msra.mxu0 0.0
    %1750 = vmatprep.subr.mxu0 0.0
    %1751 = vmatpush1.msra.mxu0 0.0
    %1752 = vmatprep.mubr.f32.mxu0 0.0
    %1753 = vmatmul.mubr.f32.gmra.mrb[0].mxu0 %v1683
    %v1754 = vpop.f32.mrb[0].mxu0
    %v1755 = vadd.f32 %v1681, %v1754
    %v1756 = vpop.f32.mrb[0].mxu0
    %1757 = vmatprep.mubr.f32.mxu0 0.0
    %1758 = vmatmul.mubr.f32.gmra.mrb[0].mxu0 %v1686
    %v1759 = vpop.f32.mrb[0].mxu0
    %v1760 = vadd.f32 %v1681, %v1759
    %v1761 = vpop.f32.mrb[0].mxu0
    %1762 = vdwg.mxu0
    %v1763 = vmul.f32 %v1755, %v1755
    %v1764 = vmul.f32 %v1760, %v1760
    %v1765 = vmul.f32 %v1755, %v1763
    %v1766 = vmul.f32 %v1760, %v1764
    %v1767 = vmul.f32 %v1765, 0.044715
    %v1768 = vmul.f32 %v1766, 0.044715
    %v1769 = vadd.f32 %v1755, %v1767
    %v1770 = vadd.f32 %v1760, %v1768
    %v1771 = vmul.f32 %v1769, 0.7978846
    %v1772 = vmul.f32 %v1770, 0.7978846
    %v1773 = vtanh.pop %v1771
    %v1774 = vtanh.pop %v1772
    %v1775 = vadd.f32 %v1773, 1.0
    %v1776 = vadd.f32 %v1774, 1.0
    %v1777 = vmul.f32 %v1775, 0.5
    %v1778 = vmul.f32 %v1776, 0.5
    %v1779 = vmul.f32 %v1755, %v1777
    %v1780 = vmul.f32 %v1760, %v1778
    %s1781 = scalar_lea.vmem %s5, 64
    %v1782 = vld [vmem:[%s1781] sm:$0xff]
    %v1783 = vld [vmem:[%s1781 + $0x8] sm:$0xff]
    %v1784 = vld [vmem:[%s1781 + $0x10] sm:$0xff]
    %v1785 = vld [vmem:[%s1781 + $0x18] sm:$0xff]
    %v1786 = vld [vmem:[%s1781 + $0x20] sm:$0xff]
    %v1787 = vld [vmem:[%s1781 + $0x28] sm:$0xff]
    %v1788 = vld [vmem:[%s1781 + $0x30] sm:$0xff]
    %v1789 = vld [vmem:[%s1781 + $0x38] sm:$0xff]
    %v1790 = vlaneseq
    %v1791 = vshrl.u32 %v1790, 7
    %v1792 = vsub.s32 5, %v1791
    %v1793 = vrot.slane %v1090, %v1792
    %v1795 = vsel %vm958, %v1779, 0
    %v1798 = vsel %vm958, %v1780, 0
    %1800 = vmatprep.subr.mxu0 0.0
    %1801 = vmatpush1.msra.mxu0 %v1782
    %1802 = vmatprep.subr.mxu0 0.0
    %1803 = vmatpush1.msra.mxu0 %v1783
    %1804 = vmatprep.subr.mxu0 0.0
    %1805 = vmatpush1.msra.mxu0 %v1784
    %1806 = vmatprep.subr.mxu0 0.0
    %1807 = vmatpush1.msra.mxu0 %v1785
    %1808 = vmatprep.subr.mxu0 0.0
    %1809 = vmatpush1.msra.mxu0 %v1786
    %1810 = vmatprep.subr.mxu0 0.0
    %1811 = vmatpush1.msra.mxu0 %v1787
    %1812 = vmatprep.subr.mxu0 0.0
    %1813 = vmatpush1.msra.mxu0 %v1788
    %1814 = vmatprep.subr.mxu0 0.0
    %1815 = vmatpush1.msra.mxu0 %v1789
    %1816 = vmatprep.subr.mxu0 0.0
    %1817 = vmatpush1.msra.mxu0 0.0
    %1818 = vmatprep.subr.mxu0 0.0
    %1819 = vmatpush1.msra.mxu0 0.0
    %1820 = vmatprep.subr.mxu0 0.0
    %1821 = vmatpush1.msra.mxu0 0.0
    %1822 = vmatprep.subr.mxu0 0.0
    %1823 = vmatpush1.msra.mxu0 0.0
    %1824 = vmatprep.subr.mxu0 0.0
    %1825 = vmatpush1.msra.mxu0 0.0
    %1826 = vmatprep.subr.mxu0 0.0
    %1827 = vmatpush1.msra.mxu0 0.0
    %1828 = vmatprep.subr.mxu0 0.0
    %1829 = vmatpush1.msra.mxu0 0.0
    %1830 = vmatprep.subr.mxu0 0.0
    %1831 = vmatpush1.msra.mxu0 0.0
    %1832 = vmatprep.subr.mxu0 0.0
    %1833 = vmatpush1.msra.mxu0 0.0
    %1834 = vmatprep.subr.mxu0 0.0
    %1835 = vmatpush1.msra.mxu0 0.0
    %1836 = vmatprep.subr.mxu0 0.0
    %1837 = vmatpush1.msra.mxu0 0.0
    %1838 = vmatprep.subr.mxu0 0.0
    %1839 = vmatpush1.msra.mxu0 0.0
    %1840 = vmatprep.subr.mxu0 0.0
    %1841 = vmatpush1.msra.mxu0 0.0
    %1842 = vmatprep.subr.mxu0 0.0
    %1843 = vmatpush1.msra.mxu0 0.0
    %1844 = vmatprep.subr.mxu0 0.0
    %1845 = vmatpush1.msra.mxu0 0.0
    %1846 = vmatprep.subr.mxu0 0.0
    %1847 = vmatpush1.msra.mxu0 0.0
    %1848 = vmatprep.subr.mxu0 0.0
    %1849 = vmatpush1.msra.mxu0 0.0
    %1850 = vmatprep.subr.mxu0 0.0
    %1851 = vmatpush1.msra.mxu0 0.0
    %1852 = vmatprep.subr.mxu0 0.0
    %1853 = vmatpush1.msra.mxu0 0.0
    %1854 = vmatprep.subr.mxu0 0.0
    %1855 = vmatpush1.msra.mxu0 0.0
    %1856 = vmatprep.subr.mxu0 0.0
    %1857 = vmatpush1.msra.mxu0 0.0
    %1858 = vmatprep.subr.mxu0 0.0
    %1859 = vmatpush1.msra.mxu0 0.0
    %1860 = vmatprep.subr.mxu0 0.0
    %1861 = vmatpush1.msra.mxu0 0.0
    %1862 = vmatprep.subr.mxu0 0.0
    %1863 = vmatpush1.msra.mxu0 0.0
    %1864 = vmatprep.mubr.f32.mxu0 0.0
    %1865 = vmatmul.mubr.f32.gmra.mrb[0].mxu0 %v1795
    %v1866 = vpop.f32.mrb[0].mxu0
    %v1867 = vadd.f32 %v1793, %v1866
    %v1868 = vpop.f32.mrb[0].mxu0
    %1869 = vmatprep.mubr.f32.mxu0 0.0
    %1870 = vmatmul.mubr.f32.gmra.mrb[0].mxu0 %v1798
    %v1871 = vpop.f32.mrb[0].mxu0
    %v1872 = vadd.f32 %v1793, %v1871
    %v1873 = vpop.f32.mrb[0].mxu0
    %1874 = vdwg.mxu0
    %v1875 = vadd.f32 %v1867, %v1676
    %v1876 = vadd.f32 %v1872, %v1677
    %v1877 = vsel %vm171, %v1875, 0.0
    %1878 = vadd.xlane.f32.xlu0 %v1877
    %v1879 = vpop.xlane.xlu0 %1878
    %v1880 = vsel %vm171, %v1876, 0.0
    %1881 = vadd.xlane.f32.xlu0 %v1880
    %v1882 = vpop.xlane.xlu0 %1881
    %v1883 = vmul.f32 %v1879, %v178
    %v1884 = vmul.f32 %v1882, %v178
    %v1885 = vsub.f32 %v1875, %v1883
    %v1886 = vsub.f32 %v1876, %v1884
    %v1887 = vmul.f32 %v1885, %v1885
    %v1888 = vmul.f32 %v1886, %v1886
    %v1889 = vsel %vm171, %v1887, 0.0
    %1890 = vadd.xlane.f32.xlu0 %v1889
    %v1891 = vpop.xlane.xlu0 %1890
    %v1892 = vsel %vm171, %v1888, 0.0
    %1893 = vadd.xlane.f32.xlu0 %v1892
    %v1894 = vpop.xlane.xlu0 %1893
    %v1895 = vmul.f32 %v1891, %v178
    %v1896 = vmul.f32 %v1894, %v178
    %v1897 = vadd.f32 %v1895, 1e-12
    %v1898 = vadd.f32 %v1896, 1e-12
    %v1899 = vrsqrt.pop %v1897
    %v1900 = vrsqrt.pop %v1898
    %v1901 = vmul.f32 %v1885, %v1899
    %v1902 = vmul.f32 %v1886, %v1900
    %v1903 = vlaneseq
    %v1904 = vshrl.u32 %v1903, 7
    %v1905 = vsub.s32 6, %v1904
    %v1906 = vrot.slane %v1090, %v1905
    %v1907 = vmul.f32 %v1901, %v1906
    %v1908 = vmul.f32 %v1902, %v1906
    %v1909 = vlaneseq
    %v1910 = vshrl.u32 %v1909, 7
    %v1911 = vsub.s32 7, %v1910
    %v1912 = vrot.slane %v1090, %v1911
    %v1913 = vadd.f32 %v1907, %v1912
    %v1914 = vadd.f32 %v1908, %v1912
    %v1915 = vmul.u32 %v226, 8
    %vm1916 = vcmp.eq.s32.totalorder %v49, %v1915
    %v1917 = vsel %vm1916, 1, 0
    %v1918 = vcvt.s32.f32 %v1917
    %v1920 = vsel %vm223, %v1918, 0
    %1922 = vmatprep.subr.mxu0 0.0
    %1923 = vmatpush1.msra.mxu0 %v1913
    %1924 = vmatprep.subr.mxu0 0.0
    %1925 = vmatpush1.msra.mxu0 %v1914
    %1926 = vmatprep.subr.mxu0 0.0
    %1927 = vmatpush1.msra.mxu0 0.0
    %1928 = vmatprep.subr.mxu0 0.0
    %1929 = vmatpush1.msra.mxu0 0.0
    %1930 = vmatprep.subr.mxu0 0.0
    %1931 = vmatpush1.msra.mxu0 0.0
    %1932 = vmatprep.subr.mxu0 0.0
    %1933 = vmatpush1.msra.mxu0 0.0
    %1934 = vmatprep.subr.mxu0 0.0
    %1935 = vmatpush1.msra.mxu0 0.0
    %1936 = vmatprep.subr.mxu0 0.0
    %1937 = vmatpush1.msra.mxu0 0.0
    %1938 = vmatprep.subr.mxu0 0.0
    %1939 = vmatpush1.msra.mxu0 0.0
    %1940 = vmatprep.subr.mxu0 0.0
    %1941 = vmatpush1.msra.mxu0 0.0
    %1942 = vmatprep.subr.mxu0 0.0
    %1943 = vmatpush1.msra.mxu0 0.0
    %1944 = vmatprep.subr.mxu0 0.0
    %1945 = vmatpush1.msra.mxu0 0.0
    %1946 = vmatprep.subr.mxu0 0.0
    %1947 = vmatpush1.msra.mxu0 0.0
    %1948 = vmatprep.subr.mxu0 0.0
    %1949 = vmatpush1.msra.mxu0 0.0
    %1950 = vmatprep.subr.mxu0 0.0
    %1951 = vmatpush1.msra.mxu0 0.0
    %1952 = vmatprep.subr.mxu0 0.0
    %1953 = vmatpush1.msra.mxu0 0.0
    %1954 = vmatprep.subr.mxu0 0.0
    %1955 = vmatpush1.msra.mxu0 0.0
    %1956 = vmatprep.subr.mxu0 0.0
    %1957 = vmatpush1.msra.mxu0 0.0
    %1958 = vmatprep.subr.mxu0 0.0
    %1959 = vmatpush1.msra.mxu0 0.0
    %1960 = vmatprep.subr.mxu0 0.0
    %1961 = vmatpush1.msra.mxu0 0.0
    %1962 = vmatprep.subr.mxu0 0.0
    %1963 = vmatpush1.msra.mxu0 0.0
    %1964 = vmatprep.subr.mxu0 0.0
    %1965 = vmatpush1.msra.mxu0 0.0
    %1966 = vmatprep.subr.mxu0 0.0
    %1967 = vmatpush1.msra.mxu0 0.0
    %1968 = vmatprep.subr.mxu0 0.0
    %1969 = vmatpush1.msra.mxu0 0.0
    %1970 = vmatprep.subr.mxu0 0.0
    %1971 = vmatpush1.msra.mxu0 0.0
    %1972 = vmatprep.subr.mxu0 0.0
    %1973 = vmatpush1.msra.mxu0 0.0
    %1974 = vmatprep.subr.mxu0 0.0
    %1975 = vmatpush1.msra.mxu0 0.0
    %1976 = vmatprep.subr.mxu0 0.0
    %1977 = vmatpush1.msra.mxu0 0.0
    %1978 = vmatprep.subr.mxu0 0.0
    %1979 = vmatpush1.msra.mxu0 0.0
    %1980 = vmatprep.subr.mxu0 0.0
    %1981 = vmatpush1.msra.mxu0 0.0
    %1982 = vmatprep.subr.mxu0 0.0
    %1983 = vmatpush1.msra.mxu0 0.0
    %1984 = vmatprep.subr.mxu0 0.0
    %1985 = vmatpush1.msra.mxu0 0.0
    %1986 = vmatprep.mubr.f32.mxu0 0.0
    %1987 = vmatmul.mubr.f32.gmra.mrb[0].mxu0 %v1920
    %v1988 = vpop.f32.mrb[0].mxu0
    %v1989 = vadd.f32 0.0, %v1988
    %v1990 = vpop.f32.mrb[0].mxu0
    %1991 = vdwg.mxu0
    %v1992 = vld [vmem:[%s7] sm:$0xff]
    %v1993 = vld [vmem:[%s7 + $0x8] sm:$0xff]
    %v1994 = vld [vmem:[%s7 + $0x10] sm:$0xff]
    %v1995 = vld [vmem:[%s7 + $0x18] sm:$0xff]
    %v1996 = vld [vmem:[%s7 + $0x22] sm:$0x1]
    %v1997 = vld [vmem:[%s7 + $0x23] sm:$0x1]
    %v1998 = vlaneseq
    %v1999 = vshrl.u32 %v1998, 7
    %v2000 = vsub.s32 0, %v1999
    %v2001 = vrot.slane %v1996, %v2000
    %v2003 = vsel %vm171, %v1989, 0
    %2005 = vmatprep.subr.mxu0 0.0
    %2006 = vmatpush1.msra.mxu0 %v1992
    %2007 = vmatprep.subr.mxu0 0.0
    %2008 = vmatpush1.msra.mxu0 %v1993
    %2009 = vmatprep.subr.mxu0 0.0
    %2010 = vmatpush1.msra.mxu0 %v1994
    %2011 = vmatprep.subr.mxu0 0.0
    %2012 = vmatpush1.msra.mxu0 %v1995
    %2013 = vmatprep.subr.mxu0 0.0
    %2014 = vmatpush1.msra.mxu0 0.0
    %2015 = vmatprep.subr.mxu0 0.0
    %2016 = vmatpush1.msra.mxu0 0.0
    %2017 = vmatprep.subr.mxu0 0.0
    %2018 = vmatpush1.msra.mxu0 0.0
    %2019 = vmatprep.subr.mxu0 0.0
    %2020 = vmatpush1.msra.mxu0 0.0
    %2021 = vmatprep.subr.mxu0 0.0
    %2022 = vmatpush1.msra.mxu0 0.0
    %2023 = vmatprep.subr.mxu0 0.0
    %2024 = vmatpush1.msra.mxu0 0.0
    %2025 = vmatprep.subr.mxu0 0.0
    %2026 = vmatpush1.msra.mxu0 0.0
    %2027 = vmatprep.subr.mxu0 0.0
    %2028 = vmatpush1.msra.mxu0 0.0
    %2029 = vmatprep.subr.mxu0 0.0
    %2030 = vmatpush1.msra.mxu0 0.0
    %2031 = vmatprep.subr.mxu0 0.0
    %2032 = vmatpush1.msra.mxu0 0.0
    %2033 = vmatprep.subr.mxu0 0.0
    %2034 = vmatpush1.msra.mxu0 0.0
    %2035 = vmatprep.subr.mxu0 0.0
    %2036 = vmatpush1.msra.mxu0 0.0
    %2037 = vmatprep.subr.mxu0 0.0
    %2038 = vmatpush1.msra.mxu0 0.0
    %2039 = vmatprep.subr.mxu0 0.0
    %2040 = vmatpush1.msra.mxu0 0.0
    %2041 = vmatprep.subr.mxu0 0.0
    %2042 = vmatpush1.msra.mxu0 0.0
    %2043 = vmatprep.subr.mxu0 0.0
    %2044 = vmatpush1.msra.mxu0 0.0
    %2045 = vmatprep.subr.mxu0 0.0
    %2046 = vmatpush1.msra.mxu0 0.0
    %2047 = vmatprep.subr.mxu0 0.0
    %2048 = vmatpush1.msra.mxu0 0.0
    %2049 = vmatprep.subr.mxu0 0.0
    %2050 = vmatpush1.msra.mxu0 0.0
    %2051 = vmatprep.subr.mxu0 0.0
    %2052 = vmatpush1.msra.mxu0 0.0
    %2053 = vmatprep.subr.mxu0 0.0
    %2054 = vmatpush1.msra.mxu0 0.0
    %2055 = vmatprep.subr.mxu0 0.0
    %2056 = vmatpush1.msra.mxu0 0.0
    %2057 = vmatprep.subr.mxu0 0.0
    %2058 = vmatpush1.msra.mxu0 0.0
    %2059 = vmatprep.subr.mxu0 0.0
    %2060 = vmatpush1.msra.mxu0 0.0
    %2061 = vmatprep.subr.mxu0 0.0
    %2062 = vmatpush1.msra.mxu0 0.0
    %2063 = vmatprep.subr.mxu0 0.0
    %2064 = vmatpush1.msra.mxu0 0.0
    %2065 = vmatprep.subr.mxu0 0.0
    %2066 = vmatpush1.msra.mxu0 0.0
    %2067 = vmatprep.subr.mxu0 0.0
    %2068 = vmatpush1.msra.mxu0 0.0
    %2069 = vmatprep.mubr.f32.mxu0 0.0
    %2070 = vmatmul.mubr.f32.gmra.mrb[0].mxu0 %v2003
    %v2071 = vpop.f32.mrb[0].mxu0
    %v2072 = vadd.f32 %v2001, %v2071
    %v2073 = vpop.f32.mrb[0].mxu0
    %2074 = vdwg.mxu0
    %v2075 = vtanh.pop %v2072
    %v2076 = vlaneseq
    %v2077 = vshrl.u32 %v2076, 7
    %v2078 = vsub.s32 0, %v2077
    %v2079 = vrot.slane %v1997, %v2078
    %2084 = vrot.lane.b32.xlu0 %v1992, 96
    %v2085 = vpop.permute.xlu0 %2084
    %2086 = vrot.lane.b32.xlu0 %v1993, 96
    %v2087 = vpop.permute.xlu0 %2086
    %2088 = vrot.lane.b32.xlu0 %v1994, 96
    %v2089 = vpop.permute.xlu0 %2088
    %2090 = vrot.lane.b32.xlu0 %v1995, 96
    %v2091 = vpop.permute.xlu0 %2090
    %v2097 = vsel %vm171, %v2075, 0
    %2099 = vmatprep.subr.mxu0 0.0
    %2100 = vmatpush1.msra.mxu0 %v2085
    %2101 = vmatprep.subr.mxu0 0.0
    %2102 = vmatpush1.msra.mxu0 %v2087
    %2103 = vmatprep.subr.mxu0 0.0
    %2104 = vmatpush1.msra.mxu0 %v2089
    %2105 = vmatprep.subr.mxu0 0.0
    %2106 = vmatpush1.msra.mxu0 %v2091
    %2107 = vmatprep.subr.mxu0 0.0
    %2108 = vmatpush1.msra.mxu0 0.0
    %2109 = vmatprep.subr.mxu0 0.0
    %2110 = vmatpush1.msra.mxu0 0.0
    %2111 = vmatprep.subr.mxu0 0.0
    %2112 = vmatpush1.msra.mxu0 0.0
    %2113 = vmatprep.subr.mxu0 0.0
    %2114 = vmatpush1.msra.mxu0 0.0
    %2115 = vmatprep.subr.mxu0 0.0
    %2116 = vmatpush1.msra.mxu0 0.0
    %2117 = vmatprep.subr.mxu0 0.0
    %2118 = vmatpush1.msra.mxu0 0.0
    %2119 = vmatprep.subr.mxu0 0.0
    %2120 = vmatpush1.msra.mxu0 0.0
    %2121 = vmatprep.subr.mxu0 0.0
    %2122 = vmatpush1.msra.mxu0 0.0
    %2123 = vmatprep.subr.mxu0 0.0
    %2124 = vmatpush1.msra.mxu0 0.0
    %2125 = vmatprep.subr.mxu0 0.0
    %2126 = vmatpush1.msra.mxu0 0.0
    %2127 = vmatprep.subr.mxu0 0.0
    %2128 = vmatpush1.msra.mxu0 0.0
    %2129 = vmatprep.subr.mxu0 0.0
    %2130 = vmatpush1.msra.mxu0 0.0
    %2131 = vmatprep.subr.mxu0 0.0
    %2132 = vmatpush1.msra.mxu0 0.0
    %2133 = vmatprep.subr.mxu0 0.0
    %2134 = vmatpush1.msra.mxu0 0.0
    %2135 = vmatprep.subr.mxu0 0.0
    %2136 = vmatpush1.msra.mxu0 0.0
    %2137 = vmatprep.subr.mxu0 0.0
    %2138 = vmatpush1.msra.mxu0 0.0
    %2139 = vmatprep.subr.mxu0 0.0
    %2140 = vmatpush1.msra.mxu0 0.0
    %2141 = vmatprep.subr.mxu0 0.0
    %2142 = vmatpush1.msra.mxu0 0.0
    %2143 = vmatprep.subr.mxu0 0.0
    %2144 = vmatpush1.msra.mxu0 0.0
    %2145 = vmatprep.subr.mxu0 0.0
    %2146 = vmatpush1.msra.mxu0 0.0
    %2147 = vmatprep.subr.mxu0 0.0
    %2148 = vmatpush1.msra.mxu0 0.0
    %2149 = vmatprep.subr.mxu0 0.0
    %2150 = vmatpush1.msra.mxu0 0.0
    %2151 = vmatprep.subr.mxu0 0.0
    %2152 = vmatpush1.msra.mxu0 0.0
    %2153 = vmatprep.subr.mxu0 0.0
    %2154 = vmatpush1.msra.mxu0 0.0
    %2155 = vmatprep.subr.mxu0 0.0
    %2156 = vmatpush1.msra.mxu0 0.0
    %2157 = vmatprep.subr.mxu0 0.0
    %2158 = vmatpush1.msra.mxu0 0.0
    %2159 = vmatprep.subr.mxu0 0.0
    %2160 = vmatpush1.msra.mxu0 0.0
    %2161 = vmatprep.subr.mxu0 0.0
    %2162 = vmatpush1.msra.mxu0 0.0
    %2163 = vmatprep.mubr.f32.mxu0 0.0
    %2164 = vmatmul.mubr.f32.gmra.mrb[0].mxu0 %v2097
    %v2165 = vpop.f32.mrb[0].mxu0
    %v2166 = vadd.f32 %v2079, %v2165
    %v2167 = vpop.f32.mrb[0].mxu0
    %2168 = vdwg.mxu0
    %vm2169 = vcmask 17408
    %2170 = vst.msk [vmem:[#allocation6] sm:$0x3] %vm2169, %v2166
    %v2171 = vsel %vm2169, %v2166, -inf
    %2172 = vmax.xlane.f32.xlu0 %v2171
    %v2173 = vpop.xlane.xlu0 %2172
    %v2174 = vsub.f32 %v2166, %v2173
    %v2175 = vmul.f32 %v2174, 1.442695
    %v2176 = vpow.pop %v2175
    %v2177 = vsel %vm2169, %v2176, 0.0
    %2178 = vadd.xlane.f32.xlu0 %v2177
    %v2179 = vpop.xlane.xlu0 %2178
    %v2180 = vrcp.pop %v2179
    %v2181 = vmul.f32 %v2176, %v2180
    %vm2182 = vcmp.eq.s32.totalorder %v226, 0
    %s2183 = sld [smem:[#allocation2]]
    %v2184 = vstv %s2183
    %v2185 = vsel %vm2182, %v2184, 0
    %vm2186 = vcmp.eq.s32.totalorder %v226, 1
    %s2187 = sld [smem:[#allocation2 + $0x1]]
    %v2188 = vstv %s2187
    %v2189 = vsel %vm2186, %v2188, %v2185
    %vm2190 = vcmp.eq.s32.totalorder %v49, %v2189
    %v2191 = vsel %vm2190, 1, 0
    %v2192 = vcvt.s32.f32 %v2191
    %v2193 = vmul.f32 %v2181, %v2192
    %v2194 = vsel %vm2169, %v2193, 0.0
    %2195 = vadd.xlane.f32.xlu0 %v2194
    %v2196 = vpop.xlane.xlu0 %2195
    %v2197 = vadd.f32 %v2196, 0.0001
    %v2198 = vsub.f32 1.0, %v2197
    %v2199 = vmul.f32 %v2198, %v2198
    %v2200 = vmul.f32 %v2199, -0.5
    %v2201 = vlog2.pop %v2197
    %v2202 = vmul.f32 %v2201, 0.6931472
    %v2203 = vmul.f32 %v2200, %v2202
    %vm2204 = vcmask 1024
    %v2205 = vsel %vm2204, %v2203, 0.0
    %2206 = vadd.xlane.f32.xlu0 %v2205
    %v2207 = vpop.xlane.xlu0 %2206
    %v2208 = vrot.slane %v2207, 4
    %v2209 = vadd.f32 %v2207, %v2208
    %v2210 = vrot.slane %v2209, 2
    %v2211 = vadd.f32 %v2209, %v2210
    %v2212 = vrot.slane %v2211, 1
    %v2213 = vadd.f32 %v2211, %v2212
    %s2214 = vtos %v2213
    %s2215 = smul.f32 %s2214, 0.5
    %s2216 = scalar_lea.smem [#allocation7], 0
    %2217 = sst [smem:[%s2216]] %s2215
    // Predicated region
    $region38: #{bert_with_focal_loss.1} parent=1 // pred_check
      _
    $region39: #{bert_with_focal_loss.1} parent=1 // pred_check_branch
      %2219 = sbr.rel (0) target = $region41
    $region40: #{bert_with_focal_loss.1} parent=1 // pred_region
      %s2221 = ssub.s32 32, 32
      %2222 = vsyncadd [#allocation3], %s2221
      %s2224 = sshll.u32 [#allocation6], 4
      %s2225 = int_to_ptr.vmem [resolvable:$true] %s2224
      %2227 = dma.vmem_to_hbm [thread:$0]  %s2225, 32, %s8, [#allocation3]
    $region41: #{bert_with_focal_loss.1} parent=1 // pred_fallthru
      _
    // Predicated region
    $region42: #{bert_with_focal_loss.1} parent=1 // pred_check
      _
    $region43: #{bert_with_focal_loss.1} parent=1 // pred_check_branch
      %2229 = sbr.rel (0) target = $region45
    $region44: #{bert_with_focal_loss.1} parent=1 // pred_region
      %s2231 = ssub.s32 16, 16
      %2232 = vsyncadd [#allocation4], %s2231
      %2235 = dma.smem_to_hbm [#allocation7], 16, %s9, [#allocation4]
    $region45: #{bert_with_focal_loss.1} parent=1 // pred_fallthru
      _
    // Predicated region
    $region46: #{bert_with_focal_loss.1} parent=1 // pred_check
      _
    $region47: #{bert_with_focal_loss.1} parent=1 // pred_check_branch
      %2237 = sbr.rel (0) target = $region49
    $region48: #{bert_with_focal_loss.1} parent=1 // pred_region
      %2238 = dma.done [#allocation3], 32
    $region49: #{bert_with_focal_loss.1} parent=1 // pred_fallthru
      _
    // Predicated region
    $region50: #{bert_with_focal_loss.1} parent=1 // pred_check
      _
    $region51: #{bert_with_focal_loss.1} parent=1 // pred_check_branch
      %2240 = sbr.rel (0) target = $region53
    $region52: #{bert_with_focal_loss.1} parent=1 // pred_region
      %2241 = dma.done [#allocation4], 16
    $region53: #{bert_with_focal_loss.1} parent=1 // pred_fallthru
      _
    %2242 = sfence
    %2243 = vsyncpa [#allocation3], 1
    %2244 = vsyncpa [#allocation4], 1
    %2245 = vsyncpa [#allocation5], 1

</llo_original>
